<compile_context>
chip_gen: v6e
topology: v6e:2x2x1
jax: 0.10.0
libtpu: 0.0.40
codegen_flags: <defaults>
</compile_context>

<pallas_src>
import jax
import jax.numpy as jnp
from jax.experimental import pallas as pl
from jax.experimental.pallas import tpu as pltpu

D_IN = 640
D_OUT = 640

_INV_SQRT2 = 0.7071067811865476  # hoisted constant for exact (erf) GELU


def _linear_gelu_kernel(x_ref, w_ref, b_ref, o_ref):
    # x_ref: (tm, D_IN), w_ref: (D_IN, D_OUT), b_ref: (1, D_OUT), o_ref: (tm, D_OUT)
    y = jnp.dot(x_ref[...], w_ref[...], preferred_element_type=jnp.float32)
    y = y + b_ref[...]  # bias broadcast over rows, f32 epilogue
    # Exact GELU (erf-based) == torch.nn.GELU default
    g = 0.5 * y * (1.0 + jax.lax.erf(y * _INV_SQRT2))
    o_ref[...] = g.astype(o_ref.dtype)


def _round_up(x, m):
    return ((x + m - 1) // m) * m


def _choose_tm(m_rows, sublane):
    """Pick a large row tile for MXU utilization while keeping >= 2 grid
    steps when possible (v7x has 2 TensorCores sharding the 'parallel' axis)."""
    if m_rows <= 2 * sublane:
        return sublane
    tm = min(512, _round_up(pl.cdiv(m_rows, 2), sublane))
    return max(tm, sublane)


def linear_gelu(x2d, w_t, b, *, tm=None):
    """x2d: (M, 640), w_t: (640, 640) = W.T (same dtype as x2d), b: (640,) f32."""
    M, K = x2d.shape
    assert K == D_IN and w_t.shape == (D_IN, D_OUT)

    sublane = 16 if x2d.dtype == jnp.bfloat16 else 8
    if tm is None:
        tm = _choose_tm(M, sublane)
    tm = max(sublane, _round_up(tm, sublane))

    # Pad the row dimension so the grid covers M exactly; padded rows sliced off below.
    M_pad = _round_up(M, tm)
    if M_pad != M:
        x2d = jnp.pad(x2d, ((0, M_pad - M), (0, 0)))

    b2d = b.reshape(1, D_OUT).astype(jnp.float32)

    out = pl.pallas_call(
        _linear_gelu_kernel,
        out_shape=jax.ShapeDtypeStruct((M_pad, D_OUT), jnp.float32),
        grid_spec=pltpu.PrefetchScalarGridSpec(
            num_scalar_prefetch=0,
            grid=(M_pad // tm,),
            in_specs=[
                pl.BlockSpec((tm, D_IN), lambda i: (i, 0)),
                # Grid-invariant weight/bias: single VMEM buffer, fetched once,
                # resident across all grid steps (no useless 1.6 MiB double buffer).
                pl.BlockSpec((D_IN, D_OUT), lambda i: (0, 0),
                             pipeline_mode=pl.Buffered(1)),
                pl.BlockSpec((1, D_OUT), lambda i: (0, 0),
                             pipeline_mode=pl.Buffered(1)),
            ],
            out_specs=pl.BlockSpec((tm, D_OUT), lambda i: (i, 0)),
        ),
        compiler_params=pltpu.CompilerParams(
            dimension_semantics=("parallel",),
            # Footprint at tm=512 f32: ~2.5 MiB in (dbl-buf) + ~2.5 MiB out
            # (dbl-buf) + ~1.6 MiB weight -> ~7 MiB, safe on v5e/v6e/v7x.
            vmem_limit_bytes=32 * 1024 * 1024,
        ),
    )(x2d, w_t, b2d)

    return out[:M] if M_pad != M else out


def prepare_params(weight, bias, *, compute_dtype=jnp.float32):
    """Pre-transpose (and optionally cast) the PyTorch-convention (out, in)
    weight ONCE, outside the per-call forward."""
    w_t = jnp.asarray(weight).T.astype(compute_dtype)  # (in, out)
    b = jnp.asarray(bias).astype(jnp.float32)
    return w_t, b


def linear_layer_tuning_forward(tokens, w_t, bias, *, tm=None):
    """tokens: (..., 640). w_t: (640, 640) already transposed to (in, out).
    bias: (640,). Returns f32 output with the same leading shape."""
    lead = tokens.shape[:-1]
    assert tokens.shape[-1] == D_IN
    x2d = tokens.reshape(-1, D_IN).astype(w_t.dtype)
    out2d = linear_gelu(x2d, w_t, bias, tm=tm)
    return out2d.reshape(*lead, D_OUT)


if __name__ == "__main__":
    key = jax.random.PRNGKey(0)
    k_x, k_w, k_b = jax.random.split(key, 3)

    # Deterministic parameter init mirroring the module:
    #  - nn.init.normal_(weight, mean=0, std=0.002)
    #  - bias keeps nn.Linear default: U(-1/sqrt(in), 1/sqrt(in))
    weight = 0.002 * jax.random.normal(k_w, (D_OUT, D_IN), dtype=jnp.float32)
    bound = 1.0 / jnp.sqrt(jnp.float32(D_IN))
    bias = jax.random.uniform(k_b, (D_OUT,), dtype=jnp.float32,
                              minval=-bound, maxval=bound)

    # Small example input consistent with the forward: (batch=2, seq=8, hidden=640)
    tokens = jax.random.normal(k_x, (2, 8, D_IN), dtype=jnp.float32)

    # Plain-JAX reference (exact erf GELU, matches torch.nn.GELU default)
    ref = jax.nn.gelu(tokens @ weight.T + bias, approximate=False)

    # f32 MXU path: tight match against the reference.
    w_t32, b32 = prepare_params(weight, bias, compute_dtype=jnp.float32)
    out32 = jax.block_until_ready(linear_layer_tuning_forward(tokens, w_t32, b32))
    assert out32.shape == (2, 8, D_OUT)
    assert jnp.allclose(out32, ref, atol=1e-5, rtol=1e-5), "f32 mismatch vs reference"

    # bf16 MXU path (f32 accumulation + f32 epilogue): looser tolerance.
    w_tbf, bbf = prepare_params(weight, bias, compute_dtype=jnp.bfloat16)
    outbf = jax.block_until_ready(linear_layer_tuning_forward(tokens, w_tbf, bbf))
    assert outbf.shape == (2, 8, D_OUT)
    assert jnp.allclose(outbf, ref, atol=2e-2, rtol=2e-2), "bf16 mismatch vs reference"

    print("KERNEL_OK")
</pallas_src>

<mosaic_0001>
module attributes {stable_mosaic.version = 11 : i64} {
  func.func @_linear_gelu_kernel(%arg0: i32, %arg1: memref<8x640xf32, #tpu.memory_space<vmem>>, %arg2: memref<640x640xf32, #tpu.memory_space<vmem>>, %arg3: memref<1x640xf32, #tpu.memory_space<vmem>>, %arg4: memref<8x640xf32, #tpu.memory_space<vmem>>) attributes {dimension_semantics = [#tpu.dimension_semantics<parallel>], iteration_bounds = array<i64: 2>, scalar_prefetch = 0 : i64, scratch_operands = 0 : i64, tpu.core_type = #tpu.core_type<tc>, window_params = [{transform_indices = @transform_0, window_bounds = array<i64: 8, 640>}, {pipeline_mode = #tpu.pipeline_mode<synchronous>, transform_indices = @transform_1, window_bounds = array<i64: 640, 640>}, {pipeline_mode = #tpu.pipeline_mode<synchronous>, transform_indices = @transform_2, window_bounds = array<i64: 1, 640>}, {transform_indices = @transform_3, window_bounds = array<i64: 8, 640>}]} {
    %c0 = arith.constant 0 : index
    %c0_0 = arith.constant 0 : index
    %0 = vector.load %arg1[%c0, %c0_0] : memref<8x640xf32, #tpu.memory_space<vmem>>, vector<8x640xf32>
    %c0_1 = arith.constant 0 : index
    %c0_2 = arith.constant 0 : index
    %1 = vector.load %arg2[%c0_1, %c0_2] : memref<640x640xf32, #tpu.memory_space<vmem>>, vector<640x640xf32>
    %cst = arith.constant dense<0.000000e+00> : vector<8x640xf32>
    %2 = tpu.matmul %0, %1, %cst {dimension_numbers = #tpu.dot_dimension_numbers<[1], [0], [0], [1], [0, 0, 1, 1], [], []>} : vector<8x640xf32>, vector<640x640xf32>, vector<8x640xf32> -> vector<8x640xf32>
    %c0_3 = arith.constant 0 : index
    %c0_4 = arith.constant 0 : index
    %3 = vector.load %arg3[%c0_3, %c0_4] : memref<1x640xf32, #tpu.memory_space<vmem>>, vector<1x640xf32>
    %4 = vector.broadcast %3 : vector<1x640xf32> to vector<8x640xf32>
    %5 = arith.addf %2, %4 : vector<8x640xf32>
    %cst_5 = arith.constant 5.000000e-01 : f32
    %6 = vector.broadcast %cst_5 : f32 to vector<8x640xf32>
    %7 = arith.mulf %6, %5 : vector<8x640xf32>
    %cst_6 = arith.constant 0.707106769 : f32
    %8 = vector.broadcast %cst_6 : f32 to vector<8x640xf32>
    %9 = arith.mulf %5, %8 : vector<8x640xf32>
    %10 = math.erf %9 : vector<8x640xf32>
    %cst_7 = arith.constant 1.000000e+00 : f32
    %11 = vector.broadcast %cst_7 : f32 to vector<8x640xf32>
    %12 = arith.addf %11, %10 : vector<8x640xf32>
    %13 = arith.mulf %7, %12 : vector<8x640xf32>
    %c0_8 = arith.constant 0 : index
    %c0_9 = arith.constant 0 : index
    %14 = vector.load %arg4[%c0_8, %c0_9] : memref<8x640xf32, #tpu.memory_space<vmem>>, vector<8x640xf32>
    tpu.vector_store %arg4[%c0_8, %c0_9], %13 {strides = array<i32>} : memref<8x640xf32, #tpu.memory_space<vmem>>, vector<8x640xf32>,
    return
  }
  func.func @transform_0(%arg0: i32) -> (i32, i32) {
    %c0_i32 = arith.constant 0 : i32
    %c0_i32_0 = arith.constant 0 : i32
    return %arg0, %c0_i32 : i32, i32
  }
  func.func @transform_1(%arg0: i32) -> (i32, i32) {
    %c0_i32 = arith.constant 0 : i32
    %c0_i32_0 = arith.constant 0 : i32
    %c0_i32_1 = arith.constant 0 : i32
    return %c0_i32, %c0_i32_0 : i32, i32
  }
  func.func @transform_2(%arg0: i32) -> (i32, i32) {
    %c0_i32 = arith.constant 0 : i32
    %c0_i32_0 = arith.constant 0 : i32
    %c0_i32_1 = arith.constant 0 : i32
    return %c0_i32, %c0_i32_0 : i32, i32
  }
  func.func @transform_3(%arg0: i32) -> (i32, i32) {
    %c0_i32 = arith.constant 0 : i32
    %c0_i32_0 = arith.constant 0 : i32
    return %arg0, %c0_i32 : i32, i32
  }
}

</mosaic_0001>

<llo_original>
// kernel: tpu_custom_call.1
$region0: #{tpu_custom_call.1}
  #allocation0 [shape = 'u32[]', space=smem, size = 0x4, offset = 0x4, fixed_abs, tag = 'smem constant byte address 0x4 - core index']
  #allocation1 [shape = 'u32[144,128]{1,0:T(1,128)}', space=vmem, size = 0x12000, scoped, tag = 'internal scratch']
  %s0 = inlined_call_operand.hbm [shape: f32[16,640], index: 0, kind: input, shape index: {}]
  %s1 = inlined_call_operand.hbm [shape: f32[640,640], index: 1, kind: input, shape index: {}]
  %s2 = inlined_call_operand.hbm [shape: f32[1,640], index: 2, kind: input, shape index: {}]
  %s3 = inlined_call_operand.hbm [shape: f32[16,640], index: 3, kind: output, shape index: {}]
  %s4 = sld [smem:[#allocation0]]
  $region57: #{tpu_custom_call.1} parent=0
    _
  %s6 = ssub.s32 1, %s4
  %s7 = scalar_select 0, %s6, %s4
  $region1: #{tpu_custom_call.1} parent=0
    #allocation2 [shape = 'u8[40960]{0}', space=vmem, size = 0xa000, scoped, tag = 'input window, operand 0']
    #allocation3 [shape = 's32[2]{0}', space=sflag, size = 0x8, scoped, tag = 'scoped memory for tpu_custom_call.1']
    #allocation4 [shape = 's32[2]{0}', space=sflag, size = 0x8, scoped, tag = 'scoped memory for tpu_custom_call.1']
    #allocation5 [shape = 'u8[1638400]{0}', space=vmem, size = 0x190000, scoped, tag = 'input window, operand 1, single buffered']
    #allocation6 [shape = 's32[1]{0}', space=sflag, size = 0x4, scoped, tag = 'scoped memory for tpu_custom_call.1']
    #allocation7 [shape = 'u8[2560]{0}', space=vmem, size = 0xc00, scoped, tag = 'input window, operand 2, single buffered']
    #allocation8 [shape = 'u8[40960]{0}', space=vmem, size = 0xa000, scoped, tag = 'output window, operand 0']
    %8 = vsyncpa [#allocation3], 0
    %s9 = scalar_lea.sflag [#allocation3], 1
    %10 = vsyncpa %s9, 0
    %11 = vsyncpa [#allocation6], 0
    %12 = vsyncpa [#allocation4], 0
    %s13 = scalar_lea.sflag [#allocation4], 1
    %14 = vsyncpa %s13, 0
    loop: start=0, step=1, limit=4
    $region2: #{tpu_custom_call.1} parent=1 // loop_pre_header
      _
    $region3: #{tpu_custom_call.1} parent=1 // loop_header
      %s16 = sphi 0, %s20
      %p17 = scmp.ge.s32.totalorder %s16, 4
      %s26 = sphi 0, %s28
      %s29 = sphi 0, %s26
      %s30 = sphi 0, %s29
      %s46 = sphi 0, %s30
      %s50 = sphi 0, %s50
      %s52 = sphi 0, %s50
      %s53 = sphi 0, %s52
      %s67 = sphi 0, %s53
      %s71 = sphi 0, %s71
      %s73 = sphi 0, %s71
      %s74 = sphi 0, %s73
      %s88 = sphi 0, %s74
      %s94 = sphi 0, %s96
      %s97 = sphi 0, %s94
      %s98 = sphi 0, %s97
      %s114 = sphi 0, %s98
    $region4: #{tpu_custom_call.1} parent=1 // loop_header_branch
      %19 = sbr.rel (%p17) target = $region8
    $region5: #{tpu_custom_call.1} parent=1 // loop_body
      %s21 = ssub.s32 %s16, 1
      %s22 = ssub.s32 %s16, 2
      %s23 = sadd.s32 %s16, 1
      %s24 = ssub.s32 %s16, %s23
      %p25 = scmp.eq.s32.totalorder %s24, 0
      %s27 = sadd.s32 %s26, 1
      %s28 = scalar_select %p25, %s26, %s27
      %p31 = pneg %p25
      %p32 = scmp.eq.s32.totalorder %s16, 1
      %p33 = por %p31, %p32
      %p34 = scmp.ne.s32.totalorder %s26, %s29
      %p35 = scmp.eq.s32.totalorder %s16, 0
      %p36 = por %p34, %p35
      %p37 = scmp.ne.s32.totalorder %s26, %s29
      %p38 = scmp.eq.s32.totalorder %s21, 1
      %p39 = por %p37, %p38
      %p40 = scmp.ne.s32.totalorder %s29, %s30
      %p41 = scmp.eq.s32.totalorder %s21, 0
      %p42 = por %p40, %p41
      %p43 = scmp.ne.s32.totalorder %s29, %s30
      %p44 = scmp.eq.s32.totalorder %s22, 1
      %p45 = por %p43, %p44
      %p47 = scmp.ne.s32.totalorder %s30, %s46
      %p48 = scmp.eq.s32.totalorder %s22, 0
      %p49 = por %p47, %p48
      %s51 = sadd.s32 %s50, 1
      %p54 = scmp.eq.s32.totalorder %s16, 1
      %p55 = scmp.ne.s32.totalorder %s50, %s52
      %p56 = scmp.eq.s32.totalorder %s16, 0
      %p57 = por %p55, %p56
      %p58 = scmp.ne.s32.totalorder %s50, %s52
      %p59 = scmp.eq.s32.totalorder %s21, 1
      %p60 = por %p58, %p59
      %p61 = scmp.ne.s32.totalorder %s52, %s53
      %p62 = scmp.eq.s32.totalorder %s21, 0
      %p63 = por %p61, %p62
      %p64 = scmp.ne.s32.totalorder %s52, %s53
      %p65 = scmp.eq.s32.totalorder %s22, 1
      %p66 = por %p64, %p65
      %p68 = scmp.ne.s32.totalorder %s53, %s67
      %p69 = scmp.eq.s32.totalorder %s22, 0
      %p70 = por %p68, %p69
      %s72 = sadd.s32 %s71, 1
      %p75 = scmp.eq.s32.totalorder %s16, 1
      %p76 = scmp.ne.s32.totalorder %s71, %s73
      %p77 = scmp.eq.s32.totalorder %s16, 0
      %p78 = por %p76, %p77
      %p79 = scmp.ne.s32.totalorder %s71, %s73
      %p80 = scmp.eq.s32.totalorder %s21, 1
      %p81 = por %p79, %p80
      %p82 = scmp.ne.s32.totalorder %s73, %s74
      %p83 = scmp.eq.s32.totalorder %s21, 0
      %p84 = por %p82, %p83
      %p85 = scmp.ne.s32.totalorder %s73, %s74
      %p86 = scmp.eq.s32.totalorder %s22, 1
      %p87 = por %p85, %p86
      %p89 = scmp.ne.s32.totalorder %s74, %s88
      %p90 = scmp.eq.s32.totalorder %s22, 0
      %p91 = por %p89, %p90
      %s92 = ssub.s32 %s16, %s23
      %p93 = scmp.eq.s32.totalorder %s92, 0
      %s95 = sadd.s32 %s94, 1
      %s96 = scalar_select %p93, %s94, %s95
      %p99 = pneg %p93
      %p100 = scmp.eq.s32.totalorder %s16, 1
      %p101 = por %p99, %p100
      %p102 = scmp.ne.s32.totalorder %s94, %s97
      %p103 = scmp.eq.s32.totalorder %s16, 0
      %p104 = por %p102, %p103
      %p105 = scmp.ne.s32.totalorder %s94, %s97
      %p106 = scmp.eq.s32.totalorder %s21, 1
      %p107 = por %p105, %p106
      %p108 = scmp.ne.s32.totalorder %s97, %s98
      %p109 = scmp.eq.s32.totalorder %s21, 0
      %p110 = por %p108, %p109
      %p111 = scmp.ne.s32.totalorder %s97, %s98
      %p112 = scmp.eq.s32.totalorder %s22, 1
      %p113 = por %p111, %p112
      %p115 = scmp.ne.s32.totalorder %s98, %s114
      %p116 = scmp.eq.s32.totalorder %s22, 0
      %p117 = por %p115, %p116
      %p118 = scmp.le.s32.totalorder 1, %s16
      %p119 = scmp.lt.s32.totalorder %s16, 3
      %p120 = pnand %p118, %p119
      %p121 = pneg %p120
      // Predicated region
      $region9: #{tpu_custom_call.1} parent=5 // pred_check
        _
      $region10: #{tpu_custom_call.1} parent=5 // pred_check_branch
        %123 = sbr.rel (%p120) target = $region12
      $region11: #{tpu_custom_call.1} parent=5 // pred_region
        %s124 = ssub.s32 %s16, 1
        // Predicated region
        $region13: #{tpu_custom_call.1} parent=11 // pred_check
          %p125 = pneg %p63
        $region14: #{tpu_custom_call.1} parent=11 // pred_check_branch
          %127 = sbr.rel (%p125) target = $region16
        $region15: #{tpu_custom_call.1} parent=11 // pred_region
          %s129 = ssub.s32 51200, 51200
          %130 = vsyncadd [#allocation6], %s129
          %s131 = sshll.u32 [#allocation5], 4
          %s132 = int_to_ptr.vmem [resolvable:$true] %s131
          %137 = dma.hbm_to_vmem [thread:$0]  %s1, 51200, %s132, [#allocation6], 640, 640, 40
        $region16: #{tpu_custom_call.1} parent=11 // pred_fallthru
          _
        // Predicated region
        $region17: #{tpu_custom_call.1} parent=11 // pred_check
          %p138 = pneg %p84
        $region18: #{tpu_custom_call.1} parent=11 // pred_check_branch
          %140 = sbr.rel (%p138) target = $region20
        $region19: #{tpu_custom_call.1} parent=11 // pred_region
          %s142 = ssub.s32 80, 80
          %143 = vsyncadd [#allocation6], %s142
          %s145 = sshll.u32 [#allocation7], 4
          %s146 = int_to_ptr.vmem [resolvable:$true] %s145
          %148 = dma.hbm_to_vmem [thread:$0]  %s2, 80, %s146, [#allocation6]
        $region20: #{tpu_custom_call.1} parent=11 // pred_fallthru
          _
      $region12: #{tpu_custom_call.1} parent=5 // pred_fallthru
        _
      %p149 = scmp.lt.s32.totalorder %s16, 2
      // Predicated region
      $region21: #{tpu_custom_call.1} parent=5 // pred_check
        %p150 = pneg %p149
      $region22: #{tpu_custom_call.1} parent=5 // pred_check_branch
        %152 = sbr.rel (%p150) target = $region24
      $region23: #{tpu_custom_call.1} parent=5 // pred_region
        // Predicated region
        $region25: #{tpu_custom_call.1} parent=23 // pred_check
          %p153 = pneg %p36
        $region26: #{tpu_custom_call.1} parent=23 // pred_check_branch
          %155 = sbr.rel (%p153) target = $region28
        $region27: #{tpu_custom_call.1} parent=23 // pred_region
          %s156 = sand.u32 %s26, 1
          %s157 = scalar_lea.sflag [#allocation3], %s156
          %s158 = sand.u32 %s26, 1
          %s159 = smul.addr %s158, 40
          %s160 = scalar_lea.vmem [#allocation2], %s159
          %s162 = ssub.s32 640, 640
          %163 = vsyncadd %s157, %s162
          %s164 = smul.addr %s16, 5
          %s165 = smul.addr %s164, 128
          %s166 = scalar_lea.hbm %s0, %s165
          %s168 = sshll.u32 %s160, 4
          %s169 = int_to_ptr.vmem [resolvable:$true] %s168
          %171 = dma.hbm_to_vmem [thread:$0]  %s166, 640, %s169, %s157
        $region28: #{tpu_custom_call.1} parent=23 // pred_fallthru
          _
      $region24: #{tpu_custom_call.1} parent=5 // pred_fallthru
        _
      %p172 = scmp.le.s32.totalorder 1, %s16
      %p173 = scmp.lt.s32.totalorder %s16, 3
      %p174 = pnand %p172, %p173
      %p175 = pneg %p174
      // Predicated region
      $region29: #{tpu_custom_call.1} parent=5 // pred_check
        _
      $region30: #{tpu_custom_call.1} parent=5 // pred_check_branch
        %177 = sbr.rel (%p174) target = $region32
      $region31: #{tpu_custom_call.1} parent=5 // pred_region
        %s178 = ssub.s32 %s16, 1
        %s179 = sand.u32 %s29, 1
        %s180 = scalar_lea.sflag [#allocation3], %s179
        %s181 = sand.u32 %s29, 1
        %s182 = smul.addr %s181, 40
        %s183 = scalar_lea.vmem [#allocation2], %s182
        // Predicated region
        $region33: #{tpu_custom_call.1} parent=31 // pred_check
          %p184 = pneg %p42
        $region34: #{tpu_custom_call.1} parent=31 // pred_check_branch
          %186 = sbr.rel (%p184) target = $region36
        $region35: #{tpu_custom_call.1} parent=31 // pred_region
          %187 = dma.done %s180, 640
        $region36: #{tpu_custom_call.1} parent=31 // pred_fallthru
          _
        // Predicated region
        $region37: #{tpu_custom_call.1} parent=31 // pred_check
          %p188 = pneg %p63
        $region38: #{tpu_custom_call.1} parent=31 // pred_check_branch
          %190 = sbr.rel (%p188) target = $region40
        $region39: #{tpu_custom_call.1} parent=31 // pred_region
          %191 = dma.done [#allocation6], 51200
        $region40: #{tpu_custom_call.1} parent=31 // pred_fallthru
          _
        // Predicated region
        $region41: #{tpu_custom_call.1} parent=31 // pred_check
          %p192 = pneg %p84
        $region42: #{tpu_custom_call.1} parent=31 // pred_check_branch
          %194 = sbr.rel (%p192) target = $region44
        $region43: #{tpu_custom_call.1} parent=31 // pred_region
          %195 = dma.done [#allocation6], 80
        $region44: #{tpu_custom_call.1} parent=31 // pred_fallthru
          _
        %s196 = sand.u32 %s29, 1
        %s197 = scalar_lea.sflag [#allocation3], %s196
        %s198 = sand.u32 %s29, 1
        %s199 = smul.addr %s198, 40
        %s200 = scalar_lea.vmem [#allocation2], %s199
        %p201 = pneg %p42
        %p202 = pneg %p39
        %p203 = pneg %p63
        %p204 = pneg %p60
        %p205 = pneg %p84
        %p206 = pneg %p81
        %p207 = pneg %p110
        %p208 = pneg %p107
        %s209 = sand.u32 %s97, 1
        %s210 = scalar_lea.sflag [#allocation4], %s209
        %s211 = sand.u32 %s97, 1
        %s212 = smul.addr %s211, 40
        %s213 = scalar_lea.vmem [#allocation8], %s212
        %v214 = vld [vmem:[%s183] sm:$0xff]
        %v215 = vld [vmem:[%s183 + $0x8] sm:$0xff]
        %v216 = vld [vmem:[%s183 + $0x10] sm:$0xff]
        %v217 = vld [vmem:[%s183 + $0x18] sm:$0xff]
        %v218 = vld [vmem:[%s183 + $0x20] sm:$0xff]
        %v219 = vld [vmem:[#allocation5] sm:$0xff]
        %v220 = vld [vmem:[#allocation5 + $0x8] sm:$0xff]
        %v221 = vld [vmem:[#allocation5 + $0x10] sm:$0xff]
        %v222 = vld [vmem:[#allocation5 + $0x18] sm:$0xff]
        %v223 = vld [vmem:[#allocation5 + $0x20] sm:$0xff]
        %v224 = vld [vmem:[#allocation5 + $0x28] sm:$0xff]
        %v225 = vld [vmem:[#allocation5 + $0x30] sm:$0xff]
        %v226 = vld [vmem:[#allocation5 + $0x38] sm:$0xff]
        %v227 = vld [vmem:[#allocation5 + $0x40] sm:$0xff]
        %v228 = vld [vmem:[#allocation5 + $0x48] sm:$0xff]
        %v229 = vld [vmem:[#allocation5 + $0x50] sm:$0xff]
        %v230 = vld [vmem:[#allocation5 + $0x58] sm:$0xff]
        %v231 = vld [vmem:[#allocation5 + $0x60] sm:$0xff]
        %v232 = vld [vmem:[#allocation5 + $0x68] sm:$0xff]
        %v233 = vld [vmem:[#allocation5 + $0x70] sm:$0xff]
        %v234 = vld [vmem:[#allocation5 + $0x78] sm:$0xff]
        %v235 = vld [vmem:[#allocation5 + $0x80] sm:$0xff]
        %v236 = vld [vmem:[#allocation5 + $0x88] sm:$0xff]
        %v237 = vld [vmem:[#allocation5 + $0x90] sm:$0xff]
        %v238 = vld [vmem:[#allocation5 + $0x98] sm:$0xff]
        %v239 = vld [vmem:[#allocation5 + $0xa0] sm:$0xff]
        %v240 = vld [vmem:[#allocation5 + $0xa8] sm:$0xff]
        %v241 = vld [vmem:[#allocation5 + $0xb0] sm:$0xff]
        %v242 = vld [vmem:[#allocation5 + $0xb8] sm:$0xff]
        %v243 = vld [vmem:[#allocation5 + $0xc0] sm:$0xff]
        %v244 = vld [vmem:[#allocation5 + $0xc8] sm:$0xff]
        %v245 = vld [vmem:[#allocation5 + $0xd0] sm:$0xff]
        %v246 = vld [vmem:[#allocation5 + $0xd8] sm:$0xff]
        %v247 = vld [vmem:[#allocation5 + $0xe0] sm:$0xff]
        %v248 = vld [vmem:[#allocation5 + $0xe8] sm:$0xff]
        %v249 = vld [vmem:[#allocation5 + $0xf0] sm:$0xff]
        %v250 = vld [vmem:[#allocation5 + $0xf8] sm:$0xff]
        %v251 = vld [vmem:[#allocation5 + $0x100] sm:$0xff]
        %v252 = vld [vmem:[#allocation5 + $0x108] sm:$0xff]
        %v253 = vld [vmem:[#allocation5 + $0x110] sm:$0xff]
        %v254 = vld [vmem:[#allocation5 + $0x118] sm:$0xff]
        %v255 = vld [vmem:[#allocation5 + $0x120] sm:$0xff]
        %v256 = vld [vmem:[#allocation5 + $0x128] sm:$0xff]
        %v257 = vld [vmem:[#allocation5 + $0x130] sm:$0xff]
        %v258 = vld [vmem:[#allocation5 + $0x138] sm:$0xff]
        %v259 = vld [vmem:[#allocation5 + $0x140] sm:$0xff]
        %v260 = vld [vmem:[#allocation5 + $0x148] sm:$0xff]
        %v261 = vld [vmem:[#allocation5 + $0x150] sm:$0xff]
        %v262 = vld [vmem:[#allocation5 + $0x158] sm:$0xff]
        %v263 = vld [vmem:[#allocation5 + $0x160] sm:$0xff]
        %v264 = vld [vmem:[#allocation5 + $0x168] sm:$0xff]
        %v265 = vld [vmem:[#allocation5 + $0x170] sm:$0xff]
        %v266 = vld [vmem:[#allocation5 + $0x178] sm:$0xff]
        %v267 = vld [vmem:[#allocation5 + $0x180] sm:$0xff]
        %v268 = vld [vmem:[#allocation5 + $0x188] sm:$0xff]
        %v269 = vld [vmem:[#allocation5 + $0x190] sm:$0xff]
        %v270 = vld [vmem:[#allocation5 + $0x198] sm:$0xff]
        %v271 = vld [vmem:[#allocation5 + $0x1a0] sm:$0xff]
        %v272 = vld [vmem:[#allocation5 + $0x1a8] sm:$0xff]
        %v273 = vld [vmem:[#allocation5 + $0x1b0] sm:$0xff]
        %v274 = vld [vmem:[#allocation5 + $0x1b8] sm:$0xff]
        %v275 = vld [vmem:[#allocation5 + $0x1c0] sm:$0xff]
        %v276 = vld [vmem:[#allocation5 + $0x1c8] sm:$0xff]
        %v277 = vld [vmem:[#allocation5 + $0x1d0] sm:$0xff]
        %v278 = vld [vmem:[#allocation5 + $0x1d8] sm:$0xff]
        %v279 = vld [vmem:[#allocation5 + $0x1e0] sm:$0xff]
        %v280 = vld [vmem:[#allocation5 + $0x1e8] sm:$0xff]
        %v281 = vld [vmem:[#allocation5 + $0x1f0] sm:$0xff]
        %v282 = vld [vmem:[#allocation5 + $0x1f8] sm:$0xff]
        %v283 = vld [vmem:[#allocation5 + $0x200] sm:$0xff]
        %v284 = vld [vmem:[#allocation5 + $0x208] sm:$0xff]
        %v285 = vld [vmem:[#allocation5 + $0x210] sm:$0xff]
        %v286 = vld [vmem:[#allocation5 + $0x218] sm:$0xff]
        %v287 = vld [vmem:[#allocation5 + $0x220] sm:$0xff]
        %v288 = vld [vmem:[#allocation5 + $0x228] sm:$0xff]
        %v289 = vld [vmem:[#allocation5 + $0x230] sm:$0xff]
        %v290 = vld [vmem:[#allocation5 + $0x238] sm:$0xff]
        %v291 = vld [vmem:[#allocation5 + $0x240] sm:$0xff]
        %v292 = vld [vmem:[#allocation5 + $0x248] sm:$0xff]
        %v293 = vld [vmem:[#allocation5 + $0x250] sm:$0xff]
        %v294 = vld [vmem:[#allocation5 + $0x258] sm:$0xff]
        %v295 = vld [vmem:[#allocation5 + $0x260] sm:$0xff]
        %v296 = vld [vmem:[#allocation5 + $0x268] sm:$0xff]
        %v297 = vld [vmem:[#allocation5 + $0x270] sm:$0xff]
        %v298 = vld [vmem:[#allocation5 + $0x278] sm:$0xff]
        %v299 = vld [vmem:[#allocation5 + $0x280] sm:$0xff]
        %v300 = vld [vmem:[#allocation5 + $0x288] sm:$0xff]
        %v301 = vld [vmem:[#allocation5 + $0x290] sm:$0xff]
        %v302 = vld [vmem:[#allocation5 + $0x298] sm:$0xff]
        %v303 = vld [vmem:[#allocation5 + $0x2a0] sm:$0xff]
        %v304 = vld [vmem:[#allocation5 + $0x2a8] sm:$0xff]
        %v305 = vld [vmem:[#allocation5 + $0x2b0] sm:$0xff]
        %v306 = vld [vmem:[#allocation5 + $0x2b8] sm:$0xff]
        %v307 = vld [vmem:[#allocation5 + $0x2c0] sm:$0xff]
        %v308 = vld [vmem:[#allocation5 + $0x2c8] sm:$0xff]
        %v309 = vld [vmem:[#allocation5 + $0x2d0] sm:$0xff]
        %v310 = vld [vmem:[#allocation5 + $0x2d8] sm:$0xff]
        %v311 = vld [vmem:[#allocation5 + $0x2e0] sm:$0xff]
        %v312 = vld [vmem:[#allocation5 + $0x2e8] sm:$0xff]
        %v313 = vld [vmem:[#allocation5 + $0x2f0] sm:$0xff]
        %v314 = vld [vmem:[#allocation5 + $0x2f8] sm:$0xff]
        %v315 = vld [vmem:[#allocation5 + $0x300] sm:$0xff]
        %v316 = vld [vmem:[#allocation5 + $0x308] sm:$0xff]
        %v317 = vld [vmem:[#allocation5 + $0x310] sm:$0xff]
        %v318 = vld [vmem:[#allocation5 + $0x318] sm:$0xff]
        %v319 = vld [vmem:[#allocation5 + $0x320] sm:$0xff]
        %v320 = vld [vmem:[#allocation5 + $0x328] sm:$0xff]
        %v321 = vld [vmem:[#allocation5 + $0x330] sm:$0xff]
        %v322 = vld [vmem:[#allocation5 + $0x338] sm:$0xff]
        %v323 = vld [vmem:[#allocation5 + $0x340] sm:$0xff]
        %v324 = vld [vmem:[#allocation5 + $0x348] sm:$0xff]
        %v325 = vld [vmem:[#allocation5 + $0x350] sm:$0xff]
        %v326 = vld [vmem:[#allocation5 + $0x358] sm:$0xff]
        %v327 = vld [vmem:[#allocation5 + $0x360] sm:$0xff]
        %v328 = vld [vmem:[#allocation5 + $0x368] sm:$0xff]
        %v329 = vld [vmem:[#allocation5 + $0x370] sm:$0xff]
        %v330 = vld [vmem:[#allocation5 + $0x378] sm:$0xff]
        %v331 = vld [vmem:[#allocation5 + $0x380] sm:$0xff]
        %v332 = vld [vmem:[#allocation5 + $0x388] sm:$0xff]
        %v333 = vld [vmem:[#allocation5 + $0x390] sm:$0xff]
        %v334 = vld [vmem:[#allocation5 + $0x398] sm:$0xff]
        %v335 = vld [vmem:[#allocation5 + $0x3a0] sm:$0xff]
        %v336 = vld [vmem:[#allocation5 + $0x3a8] sm:$0xff]
        %v337 = vld [vmem:[#allocation5 + $0x3b0] sm:$0xff]
        %v338 = vld [vmem:[#allocation5 + $0x3b8] sm:$0xff]
        %v339 = vld [vmem:[#allocation5 + $0x3c0] sm:$0xff]
        %v340 = vld [vmem:[#allocation5 + $0x3c8] sm:$0xff]
        %v341 = vld [vmem:[#allocation5 + $0x3d0] sm:$0xff]
        %v342 = vld [vmem:[#allocation5 + $0x3d8] sm:$0xff]
        %v343 = vld [vmem:[#allocation5 + $0x3e0] sm:$0xff]
        %v344 = vld [vmem:[#allocation5 + $0x3e8] sm:$0xff]
        %v345 = vld [vmem:[#allocation5 + $0x3f0] sm:$0xff]
        %v346 = vld [vmem:[#allocation5 + $0x3f8] sm:$0xff]
        %v347 = vld [vmem:[#allocation5 + $0x400] sm:$0xff]
        %v348 = vld [vmem:[#allocation5 + $0x408] sm:$0xff]
        %v349 = vld [vmem:[#allocation5 + $0x410] sm:$0xff]
        %v350 = vld [vmem:[#allocation5 + $0x418] sm:$0xff]
        %v351 = vld [vmem:[#allocation5 + $0x420] sm:$0xff]
        %v352 = vld [vmem:[#allocation5 + $0x428] sm:$0xff]
        %v353 = vld [vmem:[#allocation5 + $0x430] sm:$0xff]
        %v354 = vld [vmem:[#allocation5 + $0x438] sm:$0xff]
        %v355 = vld [vmem:[#allocation5 + $0x440] sm:$0xff]
        %v356 = vld [vmem:[#allocation5 + $0x448] sm:$0xff]
        %v357 = vld [vmem:[#allocation5 + $0x450] sm:$0xff]
        %v358 = vld [vmem:[#allocation5 + $0x458] sm:$0xff]
        %v359 = vld [vmem:[#allocation5 + $0x460] sm:$0xff]
        %v360 = vld [vmem:[#allocation5 + $0x468] sm:$0xff]
        %v361 = vld [vmem:[#allocation5 + $0x470] sm:$0xff]
        %v362 = vld [vmem:[#allocation5 + $0x478] sm:$0xff]
        %v363 = vld [vmem:[#allocation5 + $0x480] sm:$0xff]
        %v364 = vld [vmem:[#allocation5 + $0x488] sm:$0xff]
        %v365 = vld [vmem:[#allocation5 + $0x490] sm:$0xff]
        %v366 = vld [vmem:[#allocation5 + $0x498] sm:$0xff]
        %v367 = vld [vmem:[#allocation5 + $0x4a0] sm:$0xff]
        %v368 = vld [vmem:[#allocation5 + $0x4a8] sm:$0xff]
        %v369 = vld [vmem:[#allocation5 + $0x4b0] sm:$0xff]
        %v370 = vld [vmem:[#allocation5 + $0x4b8] sm:$0xff]
        %v371 = vld [vmem:[#allocation5 + $0x4c0] sm:$0xff]
        %v372 = vld [vmem:[#allocation5 + $0x4c8] sm:$0xff]
        %v373 = vld [vmem:[#allocation5 + $0x4d0] sm:$0xff]
        %v374 = vld [vmem:[#allocation5 + $0x4d8] sm:$0xff]
        %v375 = vld [vmem:[#allocation5 + $0x4e0] sm:$0xff]
        %v376 = vld [vmem:[#allocation5 + $0x4e8] sm:$0xff]
        %v377 = vld [vmem:[#allocation5 + $0x4f0] sm:$0xff]
        %v378 = vld [vmem:[#allocation5 + $0x4f8] sm:$0xff]
        %v379 = vld [vmem:[#allocation5 + $0x500] sm:$0xff]
        %v380 = vld [vmem:[#allocation5 + $0x508] sm:$0xff]
        %v381 = vld [vmem:[#allocation5 + $0x510] sm:$0xff]
        %v382 = vld [vmem:[#allocation5 + $0x518] sm:$0xff]
        %v383 = vld [vmem:[#allocation5 + $0x520] sm:$0xff]
        %v384 = vld [vmem:[#allocation5 + $0x528] sm:$0xff]
        %v385 = vld [vmem:[#allocation5 + $0x530] sm:$0xff]
        %v386 = vld [vmem:[#allocation5 + $0x538] sm:$0xff]
        %v387 = vld [vmem:[#allocation5 + $0x540] sm:$0xff]
        %v388 = vld [vmem:[#allocation5 + $0x548] sm:$0xff]
        %v389 = vld [vmem:[#allocation5 + $0x550] sm:$0xff]
        %v390 = vld [vmem:[#allocation5 + $0x558] sm:$0xff]
        %v391 = vld [vmem:[#allocation5 + $0x560] sm:$0xff]
        %v392 = vld [vmem:[#allocation5 + $0x568] sm:$0xff]
        %v393 = vld [vmem:[#allocation5 + $0x570] sm:$0xff]
        %v394 = vld [vmem:[#allocation5 + $0x578] sm:$0xff]
        %v395 = vld [vmem:[#allocation5 + $0x580] sm:$0xff]
        %v396 = vld [vmem:[#allocation5 + $0x588] sm:$0xff]
        %v397 = vld [vmem:[#allocation5 + $0x590] sm:$0xff]
        %v398 = vld [vmem:[#allocation5 + $0x598] sm:$0xff]
        %v399 = vld [vmem:[#allocation5 + $0x5a0] sm:$0xff]
        %v400 = vld [vmem:[#allocation5 + $0x5a8] sm:$0xff]
        %v401 = vld [vmem:[#allocation5 + $0x5b0] sm:$0xff]
        %v402 = vld [vmem:[#allocation5 + $0x5b8] sm:$0xff]
        %v403 = vld [vmem:[#allocation5 + $0x5c0] sm:$0xff]
        %v404 = vld [vmem:[#allocation5 + $0x5c8] sm:$0xff]
        %v405 = vld [vmem:[#allocation5 + $0x5d0] sm:$0xff]
        %v406 = vld [vmem:[#allocation5 + $0x5d8] sm:$0xff]
        %v407 = vld [vmem:[#allocation5 + $0x5e0] sm:$0xff]
        %v408 = vld [vmem:[#allocation5 + $0x5e8] sm:$0xff]
        %v409 = vld [vmem:[#allocation5 + $0x5f0] sm:$0xff]
        %v410 = vld [vmem:[#allocation5 + $0x5f8] sm:$0xff]
        %v411 = vld [vmem:[#allocation5 + $0x600] sm:$0xff]
        %v412 = vld [vmem:[#allocation5 + $0x608] sm:$0xff]
        %v413 = vld [vmem:[#allocation5 + $0x610] sm:$0xff]
        %v414 = vld [vmem:[#allocation5 + $0x618] sm:$0xff]
        %v415 = vld [vmem:[#allocation5 + $0x620] sm:$0xff]
        %v416 = vld [vmem:[#allocation5 + $0x628] sm:$0xff]
        %v417 = vld [vmem:[#allocation5 + $0x630] sm:$0xff]
        %v418 = vld [vmem:[#allocation5 + $0x638] sm:$0xff]
        %v419 = vld [vmem:[#allocation5 + $0x640] sm:$0xff]
        %v420 = vld [vmem:[#allocation5 + $0x648] sm:$0xff]
        %v421 = vld [vmem:[#allocation5 + $0x650] sm:$0xff]
        %v422 = vld [vmem:[#allocation5 + $0x658] sm:$0xff]
        %v423 = vld [vmem:[#allocation5 + $0x660] sm:$0xff]
        %v424 = vld [vmem:[#allocation5 + $0x668] sm:$0xff]
        %v425 = vld [vmem:[#allocation5 + $0x670] sm:$0xff]
        %v426 = vld [vmem:[#allocation5 + $0x678] sm:$0xff]
        %v427 = vld [vmem:[#allocation5 + $0x680] sm:$0xff]
        %v428 = vld [vmem:[#allocation5 + $0x688] sm:$0xff]
        %v429 = vld [vmem:[#allocation5 + $0x690] sm:$0xff]
        %v430 = vld [vmem:[#allocation5 + $0x698] sm:$0xff]
        %v431 = vld [vmem:[#allocation5 + $0x6a0] sm:$0xff]
        %v432 = vld [vmem:[#allocation5 + $0x6a8] sm:$0xff]
        %v433 = vld [vmem:[#allocation5 + $0x6b0] sm:$0xff]
        %v434 = vld [vmem:[#allocation5 + $0x6b8] sm:$0xff]
        %v435 = vld [vmem:[#allocation5 + $0x6c0] sm:$0xff]
        %v436 = vld [vmem:[#allocation5 + $0x6c8] sm:$0xff]
        %v437 = vld [vmem:[#allocation5 + $0x6d0] sm:$0xff]
        %v438 = vld [vmem:[#allocation5 + $0x6d8] sm:$0xff]
        %v439 = vld [vmem:[#allocation5 + $0x6e0] sm:$0xff]
        %v440 = vld [vmem:[#allocation5 + $0x6e8] sm:$0xff]
        %v441 = vld [vmem:[#allocation5 + $0x6f0] sm:$0xff]
        %v442 = vld [vmem:[#allocation5 + $0x6f8] sm:$0xff]
        %v443 = vld [vmem:[#allocation5 + $0x700] sm:$0xff]
        %v444 = vld [vmem:[#allocation5 + $0x708] sm:$0xff]
        %v445 = vld [vmem:[#allocation5 + $0x710] sm:$0xff]
        %v446 = vld [vmem:[#allocation5 + $0x718] sm:$0xff]
        %v447 = vld [vmem:[#allocation5 + $0x720] sm:$0xff]
        %v448 = vld [vmem:[#allocation5 + $0x728] sm:$0xff]
        %v449 = vld [vmem:[#allocation5 + $0x730] sm:$0xff]
        %v450 = vld [vmem:[#allocation5 + $0x738] sm:$0xff]
        %v451 = vld [vmem:[#allocation5 + $0x740] sm:$0xff]
        %v452 = vld [vmem:[#allocation5 + $0x748] sm:$0xff]
        %v453 = vld [vmem:[#allocation5 + $0x750] sm:$0xff]
        %v454 = vld [vmem:[#allocation5 + $0x758] sm:$0xff]
        %v455 = vld [vmem:[#allocation5 + $0x760] sm:$0xff]
        %v456 = vld [vmem:[#allocation5 + $0x768] sm:$0xff]
        %v457 = vld [vmem:[#allocation5 + $0x770] sm:$0xff]
        %v458 = vld [vmem:[#allocation5 + $0x778] sm:$0xff]
        %v459 = vld [vmem:[#allocation5 + $0x780] sm:$0xff]
        %v460 = vld [vmem:[#allocation5 + $0x788] sm:$0xff]
        %v461 = vld [vmem:[#allocation5 + $0x790] sm:$0xff]
        %v462 = vld [vmem:[#allocation5 + $0x798] sm:$0xff]
        %v463 = vld [vmem:[#allocation5 + $0x7a0] sm:$0xff]
        %v464 = vld [vmem:[#allocation5 + $0x7a8] sm:$0xff]
        %v465 = vld [vmem:[#allocation5 + $0x7b0] sm:$0xff]
        %v466 = vld [vmem:[#allocation5 + $0x7b8] sm:$0xff]
        %v467 = vld [vmem:[#allocation5 + $0x7c0] sm:$0xff]
        %v468 = vld [vmem:[#allocation5 + $0x7c8] sm:$0xff]
        %v469 = vld [vmem:[#allocation5 + $0x7d0] sm:$0xff]
        %v470 = vld [vmem:[#allocation5 + $0x7d8] sm:$0xff]
        %v471 = vld [vmem:[#allocation5 + $0x7e0] sm:$0xff]
        %v472 = vld [vmem:[#allocation5 + $0x7e8] sm:$0xff]
        %v473 = vld [vmem:[#allocation5 + $0x7f0] sm:$0xff]
        %v474 = vld [vmem:[#allocation5 + $0x7f8] sm:$0xff]
        %v475 = vld [vmem:[#allocation5 + $0x800] sm:$0xff]
        %v476 = vld [vmem:[#allocation5 + $0x808] sm:$0xff]
        %v477 = vld [vmem:[#allocation5 + $0x810] sm:$0xff]
        %v478 = vld [vmem:[#allocation5 + $0x818] sm:$0xff]
        %v479 = vld [vmem:[#allocation5 + $0x820] sm:$0xff]
        %v480 = vld [vmem:[#allocation5 + $0x828] sm:$0xff]
        %v481 = vld [vmem:[#allocation5 + $0x830] sm:$0xff]
        %v482 = vld [vmem:[#allocation5 + $0x838] sm:$0xff]
        %v483 = vld [vmem:[#allocation5 + $0x840] sm:$0xff]
        %v484 = vld [vmem:[#allocation5 + $0x848] sm:$0xff]
        %v485 = vld [vmem:[#allocation5 + $0x850] sm:$0xff]
        %v486 = vld [vmem:[#allocation5 + $0x858] sm:$0xff]
        %v487 = vld [vmem:[#allocation5 + $0x860] sm:$0xff]
        %v488 = vld [vmem:[#allocation5 + $0x868] sm:$0xff]
        %v489 = vld [vmem:[#allocation5 + $0x870] sm:$0xff]
        %v490 = vld [vmem:[#allocation5 + $0x878] sm:$0xff]
        %v491 = vld [vmem:[#allocation5 + $0x880] sm:$0xff]
        %v492 = vld [vmem:[#allocation5 + $0x888] sm:$0xff]
        %v493 = vld [vmem:[#allocation5 + $0x890] sm:$0xff]
        %v494 = vld [vmem:[#allocation5 + $0x898] sm:$0xff]
        %v495 = vld [vmem:[#allocation5 + $0x8a0] sm:$0xff]
        %v496 = vld [vmem:[#allocation5 + $0x8a8] sm:$0xff]
        %v497 = vld [vmem:[#allocation5 + $0x8b0] sm:$0xff]
        %v498 = vld [vmem:[#allocation5 + $0x8b8] sm:$0xff]
        %v499 = vld [vmem:[#allocation5 + $0x8c0] sm:$0xff]
        %v500 = vld [vmem:[#allocation5 + $0x8c8] sm:$0xff]
        %v501 = vld [vmem:[#allocation5 + $0x8d0] sm:$0xff]
        %v502 = vld [vmem:[#allocation5 + $0x8d8] sm:$0xff]
        %v503 = vld [vmem:[#allocation5 + $0x8e0] sm:$0xff]
        %v504 = vld [vmem:[#allocation5 + $0x8e8] sm:$0xff]
        %v505 = vld [vmem:[#allocation5 + $0x8f0] sm:$0xff]
        %v506 = vld [vmem:[#allocation5 + $0x8f8] sm:$0xff]
        %v507 = vld [vmem:[#allocation5 + $0x900] sm:$0xff]
        %v508 = vld [vmem:[#allocation5 + $0x908] sm:$0xff]
        %v509 = vld [vmem:[#allocation5 + $0x910] sm:$0xff]
        %v510 = vld [vmem:[#allocation5 + $0x918] sm:$0xff]
        %v511 = vld [vmem:[#allocation5 + $0x920] sm:$0xff]
        %v512 = vld [vmem:[#allocation5 + $0x928] sm:$0xff]
        %v513 = vld [vmem:[#allocation5 + $0x930] sm:$0xff]
        %v514 = vld [vmem:[#allocation5 + $0x938] sm:$0xff]
        %v515 = vld [vmem:[#allocation5 + $0x940] sm:$0xff]
        %v516 = vld [vmem:[#allocation5 + $0x948] sm:$0xff]
        %v517 = vld [vmem:[#allocation5 + $0x950] sm:$0xff]
        %v518 = vld [vmem:[#allocation5 + $0x958] sm:$0xff]
        %v519 = vld [vmem:[#allocation5 + $0x960] sm:$0xff]
        %v520 = vld [vmem:[#allocation5 + $0x968] sm:$0xff]
        %v521 = vld [vmem:[#allocation5 + $0x970] sm:$0xff]
        %v522 = vld [vmem:[#allocation5 + $0x978] sm:$0xff]
        %v523 = vld [vmem:[#allocation5 + $0x980] sm:$0xff]
        %v524 = vld [vmem:[#allocation5 + $0x988] sm:$0xff]
        %v525 = vld [vmem:[#allocation5 + $0x990] sm:$0xff]
        %v526 = vld [vmem:[#allocation5 + $0x998] sm:$0xff]
        %v527 = vld [vmem:[#allocation5 + $0x9a0] sm:$0xff]
        %v528 = vld [vmem:[#allocation5 + $0x9a8] sm:$0xff]
        %v529 = vld [vmem:[#allocation5 + $0x9b0] sm:$0xff]
        %v530 = vld [vmem:[#allocation5 + $0x9b8] sm:$0xff]
        %v531 = vld [vmem:[#allocation5 + $0x9c0] sm:$0xff]
        %v532 = vld [vmem:[#allocation5 + $0x9c8] sm:$0xff]
        %v533 = vld [vmem:[#allocation5 + $0x9d0] sm:$0xff]
        %v534 = vld [vmem:[#allocation5 + $0x9d8] sm:$0xff]
        %v535 = vld [vmem:[#allocation5 + $0x9e0] sm:$0xff]
        %v536 = vld [vmem:[#allocation5 + $0x9e8] sm:$0xff]
        %v537 = vld [vmem:[#allocation5 + $0x9f0] sm:$0xff]
        %v538 = vld [vmem:[#allocation5 + $0x9f8] sm:$0xff]
        %v539 = vld [vmem:[#allocation5 + $0xa00] sm:$0xff]
        %v540 = vld [vmem:[#allocation5 + $0xa08] sm:$0xff]
        %v541 = vld [vmem:[#allocation5 + $0xa10] sm:$0xff]
        %v542 = vld [vmem:[#allocation5 + $0xa18] sm:$0xff]
        %v543 = vld [vmem:[#allocation5 + $0xa20] sm:$0xff]
        %v544 = vld [vmem:[#allocation5 + $0xa28] sm:$0xff]
        %v545 = vld [vmem:[#allocation5 + $0xa30] sm:$0xff]
        %v546 = vld [vmem:[#allocation5 + $0xa38] sm:$0xff]
        %v547 = vld [vmem:[#allocation5 + $0xa40] sm:$0xff]
        %v548 = vld [vmem:[#allocation5 + $0xa48] sm:$0xff]
        %v549 = vld [vmem:[#allocation5 + $0xa50] sm:$0xff]
        %v550 = vld [vmem:[#allocation5 + $0xa58] sm:$0xff]
        %v551 = vld [vmem:[#allocation5 + $0xa60] sm:$0xff]
        %v552 = vld [vmem:[#allocation5 + $0xa68] sm:$0xff]
        %v553 = vld [vmem:[#allocation5 + $0xa70] sm:$0xff]
        %v554 = vld [vmem:[#allocation5 + $0xa78] sm:$0xff]
        %v555 = vld [vmem:[#allocation5 + $0xa80] sm:$0xff]
        %v556 = vld [vmem:[#allocation5 + $0xa88] sm:$0xff]
        %v557 = vld [vmem:[#allocation5 + $0xa90] sm:$0xff]
        %v558 = vld [vmem:[#allocation5 + $0xa98] sm:$0xff]
        %v559 = vld [vmem:[#allocation5 + $0xaa0] sm:$0xff]
        %v560 = vld [vmem:[#allocation5 + $0xaa8] sm:$0xff]
        %v561 = vld [vmem:[#allocation5 + $0xab0] sm:$0xff]
        %v562 = vld [vmem:[#allocation5 + $0xab8] sm:$0xff]
        %v563 = vld [vmem:[#allocation5 + $0xac0] sm:$0xff]
        %v564 = vld [vmem:[#allocation5 + $0xac8] sm:$0xff]
        %v565 = vld [vmem:[#allocation5 + $0xad0] sm:$0xff]
        %v566 = vld [vmem:[#allocation5 + $0xad8] sm:$0xff]
        %v567 = vld [vmem:[#allocation5 + $0xae0] sm:$0xff]
        %v568 = vld [vmem:[#allocation5 + $0xae8] sm:$0xff]
        %v569 = vld [vmem:[#allocation5 + $0xaf0] sm:$0xff]
        %v570 = vld [vmem:[#allocation5 + $0xaf8] sm:$0xff]
        %v571 = vld [vmem:[#allocation5 + $0xb00] sm:$0xff]
        %v572 = vld [vmem:[#allocation5 + $0xb08] sm:$0xff]
        %v573 = vld [vmem:[#allocation5 + $0xb10] sm:$0xff]
        %v574 = vld [vmem:[#allocation5 + $0xb18] sm:$0xff]
        %v575 = vld [vmem:[#allocation5 + $0xb20] sm:$0xff]
        %v576 = vld [vmem:[#allocation5 + $0xb28] sm:$0xff]
        %v577 = vld [vmem:[#allocation5 + $0xb30] sm:$0xff]
        %v578 = vld [vmem:[#allocation5 + $0xb38] sm:$0xff]
        %v579 = vld [vmem:[#allocation5 + $0xb40] sm:$0xff]
        %v580 = vld [vmem:[#allocation5 + $0xb48] sm:$0xff]
        %v581 = vld [vmem:[#allocation5 + $0xb50] sm:$0xff]
        %v582 = vld [vmem:[#allocation5 + $0xb58] sm:$0xff]
        %v583 = vld [vmem:[#allocation5 + $0xb60] sm:$0xff]
        %v584 = vld [vmem:[#allocation5 + $0xb68] sm:$0xff]
        %v585 = vld [vmem:[#allocation5 + $0xb70] sm:$0xff]
        %v586 = vld [vmem:[#allocation5 + $0xb78] sm:$0xff]
        %v587 = vld [vmem:[#allocation5 + $0xb80] sm:$0xff]
        %v588 = vld [vmem:[#allocation5 + $0xb88] sm:$0xff]
        %v589 = vld [vmem:[#allocation5 + $0xb90] sm:$0xff]
        %v590 = vld [vmem:[#allocation5 + $0xb98] sm:$0xff]
        %v591 = vld [vmem:[#allocation5 + $0xba0] sm:$0xff]
        %v592 = vld [vmem:[#allocation5 + $0xba8] sm:$0xff]
        %v593 = vld [vmem:[#allocation5 + $0xbb0] sm:$0xff]
        %v594 = vld [vmem:[#allocation5 + $0xbb8] sm:$0xff]
        %v595 = vld [vmem:[#allocation5 + $0xbc0] sm:$0xff]
        %v596 = vld [vmem:[#allocation5 + $0xbc8] sm:$0xff]
        %v597 = vld [vmem:[#allocation5 + $0xbd0] sm:$0xff]
        %v598 = vld [vmem:[#allocation5 + $0xbd8] sm:$0xff]
        %v599 = vld [vmem:[#allocation5 + $0xbe0] sm:$0xff]
        %v600 = vld [vmem:[#allocation5 + $0xbe8] sm:$0xff]
        %v601 = vld [vmem:[#allocation5 + $0xbf0] sm:$0xff]
        %v602 = vld [vmem:[#allocation5 + $0xbf8] sm:$0xff]
        %v603 = vld [vmem:[#allocation5 + $0xc00] sm:$0xff]
        %v604 = vld [vmem:[#allocation5 + $0xc08] sm:$0xff]
        %v605 = vld [vmem:[#allocation5 + $0xc10] sm:$0xff]
        %v606 = vld [vmem:[#allocation5 + $0xc18] sm:$0xff]
        %v607 = vld [vmem:[#allocation5 + $0xc20] sm:$0xff]
        %v608 = vld [vmem:[#allocation5 + $0xc28] sm:$0xff]
        %v609 = vld [vmem:[#allocation5 + $0xc30] sm:$0xff]
        %v610 = vld [vmem:[#allocation5 + $0xc38] sm:$0xff]
        %v611 = vld [vmem:[#allocation5 + $0xc40] sm:$0xff]
        %v612 = vld [vmem:[#allocation5 + $0xc48] sm:$0xff]
        %v613 = vld [vmem:[#allocation5 + $0xc50] sm:$0xff]
        %v614 = vld [vmem:[#allocation5 + $0xc58] sm:$0xff]
        %v615 = vld [vmem:[#allocation5 + $0xc60] sm:$0xff]
        %v616 = vld [vmem:[#allocation5 + $0xc68] sm:$0xff]
        %v617 = vld [vmem:[#allocation5 + $0xc70] sm:$0xff]
        %v618 = vld [vmem:[#allocation5 + $0xc78] sm:$0xff]
        %v619 = vld [vmem:[#allocation7] sm:$0x1f]
        %v621 = vlaneseq
        %v622 = vshrl.u32 %v621, 7
        %v623 = vsub.s32 0, %v622
        %v624 = vrot.slane %v619, %v623
        %v625 = vlaneseq
        %v626 = vshrl.u32 %v625, 7
        %v627 = vsub.s32 1, %v626
        %v628 = vrot.slane %v619, %v627
        %v629 = vlaneseq
        %v630 = vshrl.u32 %v629, 7
        %v631 = vsub.s32 2, %v630
        %v632 = vrot.slane %v619, %v631
        %v633 = vlaneseq
        %v634 = vshrl.u32 %v633, 7
        %v635 = vsub.s32 3, %v634
        %v636 = vrot.slane %v619, %v635
        %v637 = vlaneseq
        %v638 = vshrl.u32 %v637, 7
        %v639 = vsub.s32 4, %v638
        %v640 = vrot.slane %v619, %v639
        %646 = vmatprep.subr.mxu0 %v295
        %647 = vmatpush1.msra.mxu0 %v294
        %648 = vmatprep.subr.mxu0 %v290
        %649 = vmatpush1.msra.mxu0 %v289
        %650 = vmatprep.subr.mxu0 %v285
        %651 = vmatpush1.msra.mxu0 %v284
        %652 = vmatprep.subr.mxu0 %v280
        %653 = vmatpush1.msra.mxu0 %v279
        %654 = vmatprep.subr.mxu0 %v275
        %655 = vmatpush1.msra.mxu0 %v274
        %656 = vmatprep.subr.mxu0 %v270
        %657 = vmatpush1.msra.mxu0 %v269
        %658 = vmatprep.subr.mxu0 %v265
        %659 = vmatpush1.msra.mxu0 %v264
        %660 = vmatprep.subr.mxu0 %v260
        %661 = vmatpush1.msra.mxu0 %v259
        %662 = vmatprep.subr.mxu0 %v255
        %663 = vmatpush1.msra.mxu0 %v254
        %664 = vmatprep.subr.mxu0 %v250
        %665 = vmatpush1.msra.mxu0 %v249
        %666 = vmatprep.subr.mxu0 %v245
        %667 = vmatpush1.msra.mxu0 %v244
        %668 = vmatprep.subr.mxu0 %v240
        %669 = vmatpush1.msra.mxu0 %v239
        %670 = vmatprep.subr.mxu0 %v235
        %671 = vmatpush1.msra.mxu0 %v234
        %672 = vmatprep.subr.mxu0 %v230
        %673 = vmatpush1.msra.mxu0 %v229
        %674 = vmatprep.subr.mxu0 %v225
        %675 = vmatpush1.msra.mxu0 %v224
        %676 = vmatprep.subr.mxu0 %v220
        %677 = vmatpush1.msra.mxu0 %v219
        %678 = vmatprep.subr.mxu0 %v375
        %679 = vmatpush2.msra.mxu0 %v374
        %680 = vmatprep.subr.mxu0 %v370
        %681 = vmatpush2.msra.mxu0 %v369
        %682 = vmatprep.subr.mxu0 %v365
        %683 = vmatpush2.msra.mxu0 %v364
        %684 = vmatprep.subr.mxu0 %v360
        %685 = vmatpush2.msra.mxu0 %v359
        %686 = vmatprep.subr.mxu0 %v355
        %687 = vmatpush2.msra.mxu0 %v354
        %688 = vmatprep.subr.mxu0 %v350
        %689 = vmatpush2.msra.mxu0 %v349
        %690 = vmatprep.subr.mxu0 %v345
        %691 = vmatpush2.msra.mxu0 %v344
        %692 = vmatprep.subr.mxu0 %v340
        %693 = vmatpush2.msra.mxu0 %v339
        %694 = vmatprep.subr.mxu0 %v335
        %695 = vmatpush2.msra.mxu0 %v334
        %696 = vmatprep.subr.mxu0 %v330
        %697 = vmatpush2.msra.mxu0 %v329
        %698 = vmatprep.subr.mxu0 %v325
        %699 = vmatpush2.msra.mxu0 %v324
        %700 = vmatprep.subr.mxu0 %v320
        %701 = vmatpush2.msra.mxu0 %v319
        %702 = vmatprep.subr.mxu0 %v315
        %703 = vmatpush2.msra.mxu0 %v314
        %704 = vmatprep.subr.mxu0 %v310
        %705 = vmatpush2.msra.mxu0 %v309
        %706 = vmatprep.subr.mxu0 %v305
        %707 = vmatpush2.msra.mxu0 %v304
        %708 = vmatprep.subr.mxu0 %v300
        %709 = vmatpush2.msra.mxu0 %v299
        %710 = vmatprep.mubr.f32.mxu0 %v215
        %711 = vmatmul.mubr.f32.gmra.mxu0 %v214
        %v712 = vpop.f32.mrf.mxu0
        %v713 = vadd.f32 %v624, %v712
        %v714 = vpop.f32.mrf.mxu0
        %v715 = vadd.f32 %v628, %v714
        %716 = vdwg.mxu0
        %717 = vmatprep.subr.mxu0 %v455
        %718 = vmatpush1.msra.mxu0 %v454
        %719 = vmatprep.subr.mxu0 %v450
        %720 = vmatpush1.msra.mxu0 %v449
        %721 = vmatprep.subr.mxu0 %v445
        %722 = vmatpush1.msra.mxu0 %v444
        %723 = vmatprep.subr.mxu0 %v440
        %724 = vmatpush1.msra.mxu0 %v439
        %725 = vmatprep.subr.mxu0 %v435
        %726 = vmatpush1.msra.mxu0 %v434
        %727 = vmatprep.subr.mxu0 %v430
        %728 = vmatpush1.msra.mxu0 %v429
        %729 = vmatprep.subr.mxu0 %v425
        %730 = vmatpush1.msra.mxu0 %v424
        %731 = vmatprep.subr.mxu0 %v420
        %732 = vmatpush1.msra.mxu0 %v419
        %733 = vmatprep.subr.mxu0 %v415
        %734 = vmatpush1.msra.mxu0 %v414
        %735 = vmatprep.subr.mxu0 %v410
        %736 = vmatpush1.msra.mxu0 %v409
        %737 = vmatprep.subr.mxu0 %v405
        %738 = vmatpush1.msra.mxu0 %v404
        %739 = vmatprep.subr.mxu0 %v400
        %740 = vmatpush1.msra.mxu0 %v399
        %741 = vmatprep.subr.mxu0 %v395
        %742 = vmatpush1.msra.mxu0 %v394
        %743 = vmatprep.subr.mxu0 %v390
        %744 = vmatpush1.msra.mxu0 %v389
        %745 = vmatprep.subr.mxu0 %v385
        %746 = vmatpush1.msra.mxu0 %v384
        %747 = vmatprep.subr.mxu0 %v380
        %748 = vmatpush1.msra.mxu0 %v379
        %749 = vmatprep.subr.mxu0 %v535
        %750 = vmatpush2.msra.mxu0 %v534
        %751 = vmatprep.subr.mxu0 %v530
        %752 = vmatpush2.msra.mxu0 %v529
        %753 = vmatprep.subr.mxu0 %v525
        %754 = vmatpush2.msra.mxu0 %v524
        %755 = vmatprep.subr.mxu0 %v520
        %756 = vmatpush2.msra.mxu0 %v519
        %757 = vmatprep.subr.mxu0 %v515
        %758 = vmatpush2.msra.mxu0 %v514
        %759 = vmatprep.subr.mxu0 %v510
        %760 = vmatpush2.msra.mxu0 %v509
        %761 = vmatprep.subr.mxu0 %v505
        %762 = vmatpush2.msra.mxu0 %v504
        %763 = vmatprep.subr.mxu0 %v500
        %764 = vmatpush2.msra.mxu0 %v499
        %765 = vmatprep.subr.mxu0 %v495
        %766 = vmatpush2.msra.mxu0 %v494
        %767 = vmatprep.subr.mxu0 %v490
        %768 = vmatpush2.msra.mxu0 %v489
        %769 = vmatprep.subr.mxu0 %v485
        %770 = vmatpush2.msra.mxu0 %v484
        %771 = vmatprep.subr.mxu0 %v480
        %772 = vmatpush2.msra.mxu0 %v479
        %773 = vmatprep.subr.mxu0 %v475
        %774 = vmatpush2.msra.mxu0 %v474
        %775 = vmatprep.subr.mxu0 %v470
        %776 = vmatpush2.msra.mxu0 %v469
        %777 = vmatprep.subr.mxu0 %v465
        %778 = vmatpush2.msra.mxu0 %v464
        %779 = vmatprep.subr.mxu0 %v460
        %780 = vmatpush2.msra.mxu0 %v459
        %781 = vmatprep.mubr.f32.mxu0 %v217
        %782 = vmatmul.mubr.f32.gmra.mxu0 %v216
        %v783 = vpop.f32.mrf.mxu0
        %v784 = vadd.f32 %v713, %v783
        %v785 = vpop.f32.mrf.mxu0
        %v786 = vadd.f32 %v715, %v785
        %787 = vdwg.mxu0
        %788 = vmatprep.subr.mxu0 %v615
        %789 = vmatpush1.msra.mxu0 %v614
        %790 = vmatprep.subr.mxu0 %v610
        %791 = vmatpush1.msra.mxu0 %v609
        %792 = vmatprep.subr.mxu0 %v605
        %793 = vmatpush1.msra.mxu0 %v604
        %794 = vmatprep.subr.mxu0 %v600
        %795 = vmatpush1.msra.mxu0 %v599
        %796 = vmatprep.subr.mxu0 %v595
        %797 = vmatpush1.msra.mxu0 %v594
        %798 = vmatprep.subr.mxu0 %v590
        %799 = vmatpush1.msra.mxu0 %v589
        %800 = vmatprep.subr.mxu0 %v585
        %801 = vmatpush1.msra.mxu0 %v584
        %802 = vmatprep.subr.mxu0 %v580
        %803 = vmatpush1.msra.mxu0 %v579
        %804 = vmatprep.subr.mxu0 %v575
        %805 = vmatpush1.msra.mxu0 %v574
        %806 = vmatprep.subr.mxu0 %v570
        %807 = vmatpush1.msra.mxu0 %v569
        %808 = vmatprep.subr.mxu0 %v565
        %809 = vmatpush1.msra.mxu0 %v564
        %810 = vmatprep.subr.mxu0 %v560
        %811 = vmatpush1.msra.mxu0 %v559
        %812 = vmatprep.subr.mxu0 %v555
        %813 = vmatpush1.msra.mxu0 %v554
        %814 = vmatprep.subr.mxu0 %v550
        %815 = vmatpush1.msra.mxu0 %v549
        %816 = vmatprep.subr.mxu0 %v545
        %817 = vmatpush1.msra.mxu0 %v544
        %818 = vmatprep.subr.mxu0 %v540
        %819 = vmatpush1.msra.mxu0 %v539
        %820 = vmatprep.subr.mxu0 0.0
        %821 = vmatpush2.msra.mxu0 0.0
        %822 = vmatprep.subr.mxu0 0.0
        %823 = vmatpush2.msra.mxu0 0.0
        %824 = vmatprep.subr.mxu0 0.0
        %825 = vmatpush2.msra.mxu0 0.0
        %826 = vmatprep.subr.mxu0 0.0
        %827 = vmatpush2.msra.mxu0 0.0
        %828 = vmatprep.subr.mxu0 0.0
        %829 = vmatpush2.msra.mxu0 0.0
        %830 = vmatprep.subr.mxu0 0.0
        %831 = vmatpush2.msra.mxu0 0.0
        %832 = vmatprep.subr.mxu0 0.0
        %833 = vmatpush2.msra.mxu0 0.0
        %834 = vmatprep.subr.mxu0 0.0
        %835 = vmatpush2.msra.mxu0 0.0
        %836 = vmatprep.subr.mxu0 0.0
        %837 = vmatpush2.msra.mxu0 0.0
        %838 = vmatprep.subr.mxu0 0.0
        %839 = vmatpush2.msra.mxu0 0.0
        %840 = vmatprep.subr.mxu0 0.0
        %841 = vmatpush2.msra.mxu0 0.0
        %842 = vmatprep.subr.mxu0 0.0
        %843 = vmatpush2.msra.mxu0 0.0
        %844 = vmatprep.subr.mxu0 0.0
        %845 = vmatpush2.msra.mxu0 0.0
        %846 = vmatprep.subr.mxu0 0.0
        %847 = vmatpush2.msra.mxu0 0.0
        %848 = vmatprep.subr.mxu0 0.0
        %849 = vmatpush2.msra.mxu0 0.0
        %850 = vmatprep.subr.mxu0 0.0
        %851 = vmatpush2.msra.mxu0 0.0
        %852 = vmatprep.mubr.f32.mxu0 0.0
        %853 = vmatmul.mubr.f32.gmra.mxu0 %v218
        %v854 = vpop.f32.mrf.mxu0
        %v855 = vadd.f32 %v784, %v854
        %v856 = vpop.f32.mrf.mxu0
        %v857 = vadd.f32 %v786, %v856
        %858 = vdwg.mxu0
        %859 = vmatprep.subr.mxu0 %v297
        %860 = vmatpush1.msra.mxu0 %v296
        %861 = vmatprep.subr.mxu0 %v292
        %862 = vmatpush1.msra.mxu0 %v291
        %863 = vmatprep.subr.mxu0 %v287
        %864 = vmatpush1.msra.mxu0 %v286
        %865 = vmatprep.subr.mxu0 %v282
        %866 = vmatpush1.msra.mxu0 %v281
        %867 = vmatprep.subr.mxu0 %v277
        %868 = vmatpush1.msra.mxu0 %v276
        %869 = vmatprep.subr.mxu0 %v272
        %870 = vmatpush1.msra.mxu0 %v271
        %871 = vmatprep.subr.mxu0 %v267
        %872 = vmatpush1.msra.mxu0 %v266
        %873 = vmatprep.subr.mxu0 %v262
        %874 = vmatpush1.msra.mxu0 %v261
        %875 = vmatprep.subr.mxu0 %v257
        %876 = vmatpush1.msra.mxu0 %v256
        %877 = vmatprep.subr.mxu0 %v252
        %878 = vmatpush1.msra.mxu0 %v251
        %879 = vmatprep.subr.mxu0 %v247
        %880 = vmatpush1.msra.mxu0 %v246
        %881 = vmatprep.subr.mxu0 %v242
        %882 = vmatpush1.msra.mxu0 %v241
        %883 = vmatprep.subr.mxu0 %v237
        %884 = vmatpush1.msra.mxu0 %v236
        %885 = vmatprep.subr.mxu0 %v232
        %886 = vmatpush1.msra.mxu0 %v231
        %887 = vmatprep.subr.mxu0 %v227
        %888 = vmatpush1.msra.mxu0 %v226
        %889 = vmatprep.subr.mxu0 %v222
        %890 = vmatpush1.msra.mxu0 %v221
        %891 = vmatprep.subr.mxu0 %v377
        %892 = vmatpush2.msra.mxu0 %v376
        %893 = vmatprep.subr.mxu0 %v372
        %894 = vmatpush2.msra.mxu0 %v371
        %895 = vmatprep.subr.mxu0 %v367
        %896 = vmatpush2.msra.mxu0 %v366
        %897 = vmatprep.subr.mxu0 %v362
        %898 = vmatpush2.msra.mxu0 %v361
        %899 = vmatprep.subr.mxu0 %v357
        %900 = vmatpush2.msra.mxu0 %v356
        %901 = vmatprep.subr.mxu0 %v352
        %902 = vmatpush2.msra.mxu0 %v351
        %903 = vmatprep.subr.mxu0 %v347
        %904 = vmatpush2.msra.mxu0 %v346
        %905 = vmatprep.subr.mxu0 %v342
        %906 = vmatpush2.msra.mxu0 %v341
        %907 = vmatprep.subr.mxu0 %v337
        %908 = vmatpush2.msra.mxu0 %v336
        %909 = vmatprep.subr.mxu0 %v332
        %910 = vmatpush2.msra.mxu0 %v331
        %911 = vmatprep.subr.mxu0 %v327
        %912 = vmatpush2.msra.mxu0 %v326
        %913 = vmatprep.subr.mxu0 %v322
        %914 = vmatpush2.msra.mxu0 %v321
        %915 = vmatprep.subr.mxu0 %v317
        %916 = vmatpush2.msra.mxu0 %v316
        %917 = vmatprep.subr.mxu0 %v312
        %918 = vmatpush2.msra.mxu0 %v311
        %919 = vmatprep.subr.mxu0 %v307
        %920 = vmatpush2.msra.mxu0 %v306
        %921 = vmatprep.subr.mxu0 %v302
        %922 = vmatpush2.msra.mxu0 %v301
        %923 = vmatprep.mubr.f32.mxu0 %v215
        %924 = vmatmul.mubr.f32.gmra.mxu0 %v214
        %v925 = vpop.f32.mrf.mxu0
        %v926 = vadd.f32 %v632, %v925
        %v927 = vpop.f32.mrf.mxu0
        %v928 = vadd.f32 %v636, %v927
        %929 = vdwg.mxu0
        %930 = vmatprep.subr.mxu0 %v457
        %931 = vmatpush1.msra.mxu0 %v456
        %932 = vmatprep.subr.mxu0 %v452
        %933 = vmatpush1.msra.mxu0 %v451
        %934 = vmatprep.subr.mxu0 %v447
        %935 = vmatpush1.msra.mxu0 %v446
        %936 = vmatprep.subr.mxu0 %v442
        %937 = vmatpush1.msra.mxu0 %v441
        %938 = vmatprep.subr.mxu0 %v437
        %939 = vmatpush1.msra.mxu0 %v436
        %940 = vmatprep.subr.mxu0 %v432
        %941 = vmatpush1.msra.mxu0 %v431
        %942 = vmatprep.subr.mxu0 %v427
        %943 = vmatpush1.msra.mxu0 %v426
        %944 = vmatprep.subr.mxu0 %v422
        %945 = vmatpush1.msra.mxu0 %v421
        %946 = vmatprep.subr.mxu0 %v417
        %947 = vmatpush1.msra.mxu0 %v416
        %948 = vmatprep.subr.mxu0 %v412
        %949 = vmatpush1.msra.mxu0 %v411
        %950 = vmatprep.subr.mxu0 %v407
        %951 = vmatpush1.msra.mxu0 %v406
        %952 = vmatprep.subr.mxu0 %v402
        %953 = vmatpush1.msra.mxu0 %v401
        %954 = vmatprep.subr.mxu0 %v397
        %955 = vmatpush1.msra.mxu0 %v396
        %956 = vmatprep.subr.mxu0 %v392
        %957 = vmatpush1.msra.mxu0 %v391
        %958 = vmatprep.subr.mxu0 %v387
        %959 = vmatpush1.msra.mxu0 %v386
        %960 = vmatprep.subr.mxu0 %v382
        %961 = vmatpush1.msra.mxu0 %v381
        %962 = vmatprep.subr.mxu0 %v537
        %963 = vmatpush2.msra.mxu0 %v536
        %964 = vmatprep.subr.mxu0 %v532
        %965 = vmatpush2.msra.mxu0 %v531
        %966 = vmatprep.subr.mxu0 %v527
        %967 = vmatpush2.msra.mxu0 %v526
        %968 = vmatprep.subr.mxu0 %v522
        %969 = vmatpush2.msra.mxu0 %v521
        %970 = vmatprep.subr.mxu0 %v517
        %971 = vmatpush2.msra.mxu0 %v516
        %972 = vmatprep.subr.mxu0 %v512
        %973 = vmatpush2.msra.mxu0 %v511
        %974 = vmatprep.subr.mxu0 %v507
        %975 = vmatpush2.msra.mxu0 %v506
        %976 = vmatprep.subr.mxu0 %v502
        %977 = vmatpush2.msra.mxu0 %v501
        %978 = vmatprep.subr.mxu0 %v497
        %979 = vmatpush2.msra.mxu0 %v496
        %980 = vmatprep.subr.mxu0 %v492
        %981 = vmatpush2.msra.mxu0 %v491
        %982 = vmatprep.subr.mxu0 %v487
        %983 = vmatpush2.msra.mxu0 %v486
        %984 = vmatprep.subr.mxu0 %v482
        %985 = vmatpush2.msra.mxu0 %v481
        %986 = vmatprep.subr.mxu0 %v477
        %987 = vmatpush2.msra.mxu0 %v476
        %988 = vmatprep.subr.mxu0 %v472
        %989 = vmatpush2.msra.mxu0 %v471
        %990 = vmatprep.subr.mxu0 %v467
        %991 = vmatpush2.msra.mxu0 %v466
        %992 = vmatprep.subr.mxu0 %v462
        %993 = vmatpush2.msra.mxu0 %v461
        %994 = vmatprep.mubr.f32.mxu0 %v217
        %995 = vmatmul.mubr.f32.gmra.mxu0 %v216
        %v996 = vpop.f32.mrf.mxu0
        %v997 = vadd.f32 %v926, %v996
        %v998 = vpop.f32.mrf.mxu0
        %v999 = vadd.f32 %v928, %v998
        %1000 = vdwg.mxu0
        %1001 = vmatprep.subr.mxu0 %v617
        %1002 = vmatpush1.msra.mxu0 %v616
        %1003 = vmatprep.subr.mxu0 %v612
        %1004 = vmatpush1.msra.mxu0 %v611
        %1005 = vmatprep.subr.mxu0 %v607
        %1006 = vmatpush1.msra.mxu0 %v606
        %1007 = vmatprep.subr.mxu0 %v602
        %1008 = vmatpush1.msra.mxu0 %v601
        %1009 = vmatprep.subr.mxu0 %v597
        %1010 = vmatpush1.msra.mxu0 %v596
        %1011 = vmatprep.subr.mxu0 %v592
        %1012 = vmatpush1.msra.mxu0 %v591
        %1013 = vmatprep.subr.mxu0 %v587
        %1014 = vmatpush1.msra.mxu0 %v586
        %1015 = vmatprep.subr.mxu0 %v582
        %1016 = vmatpush1.msra.mxu0 %v581
        %1017 = vmatprep.subr.mxu0 %v577
        %1018 = vmatpush1.msra.mxu0 %v576
        %1019 = vmatprep.subr.mxu0 %v572
        %1020 = vmatpush1.msra.mxu0 %v571
        %1021 = vmatprep.subr.mxu0 %v567
        %1022 = vmatpush1.msra.mxu0 %v566
        %1023 = vmatprep.subr.mxu0 %v562
        %1024 = vmatpush1.msra.mxu0 %v561
        %1025 = vmatprep.subr.mxu0 %v557
        %1026 = vmatpush1.msra.mxu0 %v556
        %1027 = vmatprep.subr.mxu0 %v552
        %1028 = vmatpush1.msra.mxu0 %v551
        %1029 = vmatprep.subr.mxu0 %v547
        %1030 = vmatpush1.msra.mxu0 %v546
        %1031 = vmatprep.subr.mxu0 %v542
        %1032 = vmatpush1.msra.mxu0 %v541
        %1033 = vmatprep.subr.mxu0 0.0
        %1034 = vmatpush2.msra.mxu0 0.0
        %1035 = vmatprep.subr.mxu0 0.0
        %1036 = vmatpush2.msra.mxu0 0.0
        %1037 = vmatprep.subr.mxu0 0.0
        %1038 = vmatpush2.msra.mxu0 0.0
        %1039 = vmatprep.subr.mxu0 0.0
        %1040 = vmatpush2.msra.mxu0 0.0
        %1041 = vmatprep.subr.mxu0 0.0
        %1042 = vmatpush2.msra.mxu0 0.0
        %1043 = vmatprep.subr.mxu0 0.0
        %1044 = vmatpush2.msra.mxu0 0.0
        %1045 = vmatprep.subr.mxu0 0.0
        %1046 = vmatpush2.msra.mxu0 0.0
        %1047 = vmatprep.subr.mxu0 0.0
        %1048 = vmatpush2.msra.mxu0 0.0
        %1049 = vmatprep.subr.mxu0 0.0
        %1050 = vmatpush2.msra.mxu0 0.0
        %1051 = vmatprep.subr.mxu0 0.0
        %1052 = vmatpush2.msra.mxu0 0.0
        %1053 = vmatprep.subr.mxu0 0.0
        %1054 = vmatpush2.msra.mxu0 0.0
        %1055 = vmatprep.subr.mxu0 0.0
        %1056 = vmatpush2.msra.mxu0 0.0
        %1057 = vmatprep.subr.mxu0 0.0
        %1058 = vmatpush2.msra.mxu0 0.0
        %1059 = vmatprep.subr.mxu0 0.0
        %1060 = vmatpush2.msra.mxu0 0.0
        %1061 = vmatprep.subr.mxu0 0.0
        %1062 = vmatpush2.msra.mxu0 0.0
        %1063 = vmatprep.subr.mxu0 0.0
        %1064 = vmatpush2.msra.mxu0 0.0
        %1065 = vmatprep.mubr.f32.mxu0 0.0
        %1066 = vmatmul.mubr.f32.gmra.mxu0 %v218
        %v1067 = vpop.f32.mrf.mxu0
        %v1068 = vadd.f32 %v997, %v1067
        %v1069 = vpop.f32.mrf.mxu0
        %v1070 = vadd.f32 %v999, %v1069
        %1071 = vdwg.mxu0
        %1072 = vmatprep.subr.mxu0 0.0
        %1073 = vmatpush1.msra.mxu0 %v298
        %1074 = vmatprep.subr.mxu0 0.0
        %1075 = vmatpush1.msra.mxu0 %v293
        %1076 = vmatprep.subr.mxu0 0.0
        %1077 = vmatpush1.msra.mxu0 %v288
        %1078 = vmatprep.subr.mxu0 0.0
        %1079 = vmatpush1.msra.mxu0 %v283
        %1080 = vmatprep.subr.mxu0 0.0
        %1081 = vmatpush1.msra.mxu0 %v278
        %1082 = vmatprep.subr.mxu0 0.0
        %1083 = vmatpush1.msra.mxu0 %v273
        %1084 = vmatprep.subr.mxu0 0.0
        %1085 = vmatpush1.msra.mxu0 %v268
        %1086 = vmatprep.subr.mxu0 0.0
        %1087 = vmatpush1.msra.mxu0 %v263
        %1088 = vmatprep.subr.mxu0 0.0
        %1089 = vmatpush1.msra.mxu0 %v258
        %1090 = vmatprep.subr.mxu0 0.0
        %1091 = vmatpush1.msra.mxu0 %v253
        %1092 = vmatprep.subr.mxu0 0.0
        %1093 = vmatpush1.msra.mxu0 %v248
        %1094 = vmatprep.subr.mxu0 0.0
        %1095 = vmatpush1.msra.mxu0 %v243
        %1096 = vmatprep.subr.mxu0 0.0
        %1097 = vmatpush1.msra.mxu0 %v238
        %1098 = vmatprep.subr.mxu0 0.0
        %1099 = vmatpush1.msra.mxu0 %v233
        %1100 = vmatprep.subr.mxu0 0.0
        %1101 = vmatpush1.msra.mxu0 %v228
        %1102 = vmatprep.subr.mxu0 0.0
        %1103 = vmatpush1.msra.mxu0 %v223
        %1104 = vmatprep.subr.mxu0 0.0
        %1105 = vmatpush2.msra.mxu0 %v378
        %1106 = vmatprep.subr.mxu0 0.0
        %1107 = vmatpush2.msra.mxu0 %v373
        %1108 = vmatprep.subr.mxu0 0.0
        %1109 = vmatpush2.msra.mxu0 %v368
        %1110 = vmatprep.subr.mxu0 0.0
        %1111 = vmatpush2.msra.mxu0 %v363
        %1112 = vmatprep.subr.mxu0 0.0
        %1113 = vmatpush2.msra.mxu0 %v358
        %1114 = vmatprep.subr.mxu0 0.0
        %1115 = vmatpush2.msra.mxu0 %v353
        %1116 = vmatprep.subr.mxu0 0.0
        %1117 = vmatpush2.msra.mxu0 %v348
        %1118 = vmatprep.subr.mxu0 0.0
        %1119 = vmatpush2.msra.mxu0 %v343
        %1120 = vmatprep.subr.mxu0 0.0
        %1121 = vmatpush2.msra.mxu0 %v338
        %1122 = vmatprep.subr.mxu0 0.0
        %1123 = vmatpush2.msra.mxu0 %v333
        %1124 = vmatprep.subr.mxu0 0.0
        %1125 = vmatpush2.msra.mxu0 %v328
        %1126 = vmatprep.subr.mxu0 0.0
        %1127 = vmatpush2.msra.mxu0 %v323
        %1128 = vmatprep.subr.mxu0 0.0
        %1129 = vmatpush2.msra.mxu0 %v318
        %1130 = vmatprep.subr.mxu0 0.0
        %1131 = vmatpush2.msra.mxu0 %v313
        %1132 = vmatprep.subr.mxu0 0.0
        %1133 = vmatpush2.msra.mxu0 %v308
        %1134 = vmatprep.subr.mxu0 0.0
        %1135 = vmatpush2.msra.mxu0 %v303
        %1136 = vmatprep.mubr.f32.mxu0 %v215
        %1137 = vmatmul.mubr.f32.gmra.mxu0 %v214
        %v1138 = vpop.f32.mrf.mxu0
        %v1139 = vadd.f32 %v640, %v1138
        %v1140 = vpop.f32.mrf.mxu0
        %1141 = vdwg.mxu0
        %1142 = vmatprep.subr.mxu0 0.0
        %1143 = vmatpush1.msra.mxu0 %v458
        %1144 = vmatprep.subr.mxu0 0.0
        %1145 = vmatpush1.msra.mxu0 %v453
        %1146 = vmatprep.subr.mxu0 0.0
        %1147 = vmatpush1.msra.mxu0 %v448
        %1148 = vmatprep.subr.mxu0 0.0
        %1149 = vmatpush1.msra.mxu0 %v443
        %1150 = vmatprep.subr.mxu0 0.0
        %1151 = vmatpush1.msra.mxu0 %v438
        %1152 = vmatprep.subr.mxu0 0.0
        %1153 = vmatpush1.msra.mxu0 %v433
        %1154 = vmatprep.subr.mxu0 0.0
        %1155 = vmatpush1.msra.mxu0 %v428
        %1156 = vmatprep.subr.mxu0 0.0
        %1157 = vmatpush1.msra.mxu0 %v423
        %1158 = vmatprep.subr.mxu0 0.0
        %1159 = vmatpush1.msra.mxu0 %v418
        %1160 = vmatprep.subr.mxu0 0.0
        %1161 = vmatpush1.msra.mxu0 %v413
        %1162 = vmatprep.subr.mxu0 0.0
        %1163 = vmatpush1.msra.mxu0 %v408
        %1164 = vmatprep.subr.mxu0 0.0
        %1165 = vmatpush1.msra.mxu0 %v403
        %1166 = vmatprep.subr.mxu0 0.0
        %1167 = vmatpush1.msra.mxu0 %v398
        %1168 = vmatprep.subr.mxu0 0.0
        %1169 = vmatpush1.msra.mxu0 %v393
        %1170 = vmatprep.subr.mxu0 0.0
        %1171 = vmatpush1.msra.mxu0 %v388
        %1172 = vmatprep.subr.mxu0 0.0
        %1173 = vmatpush1.msra.mxu0 %v383
        %1174 = vmatprep.subr.mxu0 0.0
        %1175 = vmatpush2.msra.mxu0 %v538
        %1176 = vmatprep.subr.mxu0 0.0
        %1177 = vmatpush2.msra.mxu0 %v533
        %1178 = vmatprep.subr.mxu0 0.0
        %1179 = vmatpush2.msra.mxu0 %v528
        %1180 = vmatprep.subr.mxu0 0.0
        %1181 = vmatpush2.msra.mxu0 %v523
        %1182 = vmatprep.subr.mxu0 0.0
        %1183 = vmatpush2.msra.mxu0 %v518
        %1184 = vmatprep.subr.mxu0 0.0
        %1185 = vmatpush2.msra.mxu0 %v513
        %1186 = vmatprep.subr.mxu0 0.0
        %1187 = vmatpush2.msra.mxu0 %v508
        %1188 = vmatprep.subr.mxu0 0.0
        %1189 = vmatpush2.msra.mxu0 %v503
        %1190 = vmatprep.subr.mxu0 0.0
        %1191 = vmatpush2.msra.mxu0 %v498
        %1192 = vmatprep.subr.mxu0 0.0
        %1193 = vmatpush2.msra.mxu0 %v493
        %1194 = vmatprep.subr.mxu0 0.0
        %1195 = vmatpush2.msra.mxu0 %v488
        %1196 = vmatprep.subr.mxu0 0.0
        %1197 = vmatpush2.msra.mxu0 %v483
        %1198 = vmatprep.subr.mxu0 0.0
        %1199 = vmatpush2.msra.mxu0 %v478
        %1200 = vmatprep.subr.mxu0 0.0
        %1201 = vmatpush2.msra.mxu0 %v473
        %1202 = vmatprep.subr.mxu0 0.0
        %1203 = vmatpush2.msra.mxu0 %v468
        %1204 = vmatprep.subr.mxu0 0.0
        %1205 = vmatpush2.msra.mxu0 %v463
        %1206 = vmatprep.mubr.f32.mxu0 %v217
        %1207 = vmatmul.mubr.f32.gmra.mxu0 %v216
        %v1208 = vpop.f32.mrf.mxu0
        %v1209 = vadd.f32 %v1139, %v1208
        %v1210 = vpop.f32.mrf.mxu0
        %1211 = vdwg.mxu0
        %1212 = vmatprep.subr.mxu0 0.0
        %1213 = vmatpush1.msra.mxu0 %v618
        %1214 = vmatprep.subr.mxu0 0.0
        %1215 = vmatpush1.msra.mxu0 %v613
        %1216 = vmatprep.subr.mxu0 0.0
        %1217 = vmatpush1.msra.mxu0 %v608
        %1218 = vmatprep.subr.mxu0 0.0
        %1219 = vmatpush1.msra.mxu0 %v603
        %1220 = vmatprep.subr.mxu0 0.0
        %1221 = vmatpush1.msra.mxu0 %v598
        %1222 = vmatprep.subr.mxu0 0.0
        %1223 = vmatpush1.msra.mxu0 %v593
        %1224 = vmatprep.subr.mxu0 0.0
        %1225 = vmatpush1.msra.mxu0 %v588
        %1226 = vmatprep.subr.mxu0 0.0
        %1227 = vmatpush1.msra.mxu0 %v583
        %1228 = vmatprep.subr.mxu0 0.0
        %1229 = vmatpush1.msra.mxu0 %v578
        %1230 = vmatprep.subr.mxu0 0.0
        %1231 = vmatpush1.msra.mxu0 %v573
        %1232 = vmatprep.subr.mxu0 0.0
        %1233 = vmatpush1.msra.mxu0 %v568
        %1234 = vmatprep.subr.mxu0 0.0
        %1235 = vmatpush1.msra.mxu0 %v563
        %1236 = vmatprep.subr.mxu0 0.0
        %1237 = vmatpush1.msra.mxu0 %v558
        %1238 = vmatprep.subr.mxu0 0.0
        %1239 = vmatpush1.msra.mxu0 %v553
        %1240 = vmatprep.subr.mxu0 0.0
        %1241 = vmatpush1.msra.mxu0 %v548
        %1242 = vmatprep.subr.mxu0 0.0
        %1243 = vmatpush1.msra.mxu0 %v543
        %1244 = vmatprep.subr.mxu0 0.0
        %1245 = vmatpush2.msra.mxu0 0.0
        %1246 = vmatprep.subr.mxu0 0.0
        %1247 = vmatpush2.msra.mxu0 0.0
        %1248 = vmatprep.subr.mxu0 0.0
        %1249 = vmatpush2.msra.mxu0 0.0
        %1250 = vmatprep.subr.mxu0 0.0
        %1251 = vmatpush2.msra.mxu0 0.0
        %1252 = vmatprep.subr.mxu0 0.0
        %1253 = vmatpush2.msra.mxu0 0.0
        %1254 = vmatprep.subr.mxu0 0.0
        %1255 = vmatpush2.msra.mxu0 0.0
        %1256 = vmatprep.subr.mxu0 0.0
        %1257 = vmatpush2.msra.mxu0 0.0
        %1258 = vmatprep.subr.mxu0 0.0
        %1259 = vmatpush2.msra.mxu0 0.0
        %1260 = vmatprep.subr.mxu0 0.0
        %1261 = vmatpush2.msra.mxu0 0.0
        %1262 = vmatprep.subr.mxu0 0.0
        %1263 = vmatpush2.msra.mxu0 0.0
        %1264 = vmatprep.subr.mxu0 0.0
        %1265 = vmatpush2.msra.mxu0 0.0
        %1266 = vmatprep.subr.mxu0 0.0
        %1267 = vmatpush2.msra.mxu0 0.0
        %1268 = vmatprep.subr.mxu0 0.0
        %1269 = vmatpush2.msra.mxu0 0.0
        %1270 = vmatprep.subr.mxu0 0.0
        %1271 = vmatpush2.msra.mxu0 0.0
        %1272 = vmatprep.subr.mxu0 0.0
        %1273 = vmatpush2.msra.mxu0 0.0
        %1274 = vmatprep.subr.mxu0 0.0
        %1275 = vmatpush2.msra.mxu0 0.0
        %1276 = vmatprep.mubr.f32.mxu0 0.0
        %1277 = vmatmul.mubr.f32.gmra.mxu0 %v218
        %v1278 = vpop.f32.mrf.mxu0
        %v1279 = vadd.f32 %v1209, %v1278
        %v1280 = vpop.f32.mrf.mxu0
        %1281 = vdwg.mxu0
        %v1282 = vmul.f32 %v855, 0.5
        %v1283 = vmul.f32 %v857, 0.5
        %v1284 = vmul.f32 %v1068, 0.5
        %v1285 = vmul.f32 %v1070, 0.5
        %v1286 = vmul.f32 %v1279, 0.5
        %v1287 = vmul.f32 %v855, 0.70710677
        %v1288 = vmul.f32 %v857, 0.70710677
        %v1289 = vmul.f32 %v1068, 0.70710677
        %v1290 = vmul.f32 %v1070, 0.70710677
        %v1291 = vmul.f32 %v1279, 0.70710677
        %v1292 = verf.f32.pop %v1287
        %v1293 = verf.f32.pop %v1288
        %v1294 = verf.f32.pop %v1289
        %v1295 = verf.f32.pop %v1290
        %v1296 = verf.f32.pop %v1291
        %v1297 = vadd.f32 %v1292, 1.0
        %v1298 = vadd.f32 %v1293, 1.0
        %v1299 = vadd.f32 %v1294, 1.0
        %v1300 = vadd.f32 %v1295, 1.0
        %v1301 = vadd.f32 %v1296, 1.0
        %v1302 = vmul.f32 %v1282, %v1297
        %v1303 = vmul.f32 %v1283, %v1298
        %v1304 = vmul.f32 %v1284, %v1299
        %v1305 = vmul.f32 %v1285, %v1300
        %v1306 = vmul.f32 %v1286, %v1301
        %1307 = vst [vmem:[%s213] sm:$0xff] %v1302
        %1308 = vst [vmem:[%s213 + $0x8] sm:$0xff] %v1303
        %1309 = vst [vmem:[%s213 + $0x10] sm:$0xff] %v1304
        %1310 = vst [vmem:[%s213 + $0x18] sm:$0xff] %v1305
        %1311 = vst [vmem:[%s213 + $0x20] sm:$0xff] %v1306
        %s1312 = sand.u32 %s97, 1
        %s1313 = scalar_lea.sflag [#allocation4], %s1312
        %s1314 = sand.u32 %s97, 1
        %s1315 = smul.addr %s1314, 40
        %s1316 = scalar_lea.vmem [#allocation8], %s1315
        // Predicated region
        $region45: #{tpu_custom_call.1} parent=31 // pred_check
          %p1317 = pneg %p107
        $region46: #{tpu_custom_call.1} parent=31 // pred_check_branch
          %1319 = sbr.rel (%p1317) target = $region48
        $region47: #{tpu_custom_call.1} parent=31 // pred_region
          %s1321 = ssub.s32 640, 640
          %1322 = vsyncadd %s1313, %s1321
          %s1323 = smul.addr %s21, 5
          %s1324 = smul.addr %s1323, 128
          %s1325 = scalar_lea.hbm %s3, %s1324
          %s1327 = sshll.u32 %s1316, 4
          %s1328 = int_to_ptr.vmem [resolvable:$true] %s1327
          %1330 = dma.vmem_to_hbm [thread:$0]  %s1328, 640, %s1325, %s1313
        $region48: #{tpu_custom_call.1} parent=31 // pred_fallthru
          _
      $region32: #{tpu_custom_call.1} parent=5 // pred_fallthru
        _
      %p1331 = scmp.le.s32.totalorder 2, %s16
      // Predicated region
      $region49: #{tpu_custom_call.1} parent=5 // pred_check
        %p1332 = pneg %p1331
      $region50: #{tpu_custom_call.1} parent=5 // pred_check_branch
        %1334 = sbr.rel (%p1332) target = $region52
      $region51: #{tpu_custom_call.1} parent=5 // pred_region
        %s1335 = ssub.s32 %s16, 2
        // Predicated region
        $region53: #{tpu_custom_call.1} parent=51 // pred_check
          %p1336 = pneg %p113
        $region54: #{tpu_custom_call.1} parent=51 // pred_check_branch
          %1338 = sbr.rel (%p1336) target = $region56
        $region55: #{tpu_custom_call.1} parent=51 // pred_region
          %s1339 = sand.u32 %s98, 1
          %s1340 = scalar_lea.sflag [#allocation4], %s1339
          %s1341 = sand.u32 %s98, 1
          %s1342 = smul.addr %s1341, 40
          %s1343 = scalar_lea.vmem [#allocation8], %s1342
          %1344 = dma.done %s1340, 640
        $region56: #{tpu_custom_call.1} parent=51 // pred_fallthru
          _
      $region52: #{tpu_custom_call.1} parent=5 // pred_fallthru
        _
    $region6: #{tpu_custom_call.1} parent=1 // loop_footer
      %s20 = sadd.s32 1, %s16
    $region7: #{tpu_custom_call.1} parent=1 // loop_footer_branch
      %15 = sbr.rel target = $region3
    $region8: #{tpu_custom_call.1} parent=1 // loop_exit
      _
    %1345 = vsyncpa [#allocation3], 1
    %s1346 = scalar_lea.sflag [#allocation3], 1
    %1347 = vsyncpa %s1346, 1
    %1348 = vsyncpa [#allocation6], 1
    %1349 = vsyncpa [#allocation4], 1
    %s1350 = scalar_lea.sflag [#allocation4], 1
    %1351 = vsyncpa %s1350, 1

</llo_original>
